<compile_context>
chip_gen: v5e
topology: v5e:2x2
jax: 0.10.0
libtpu: 0.0.40
codegen_flags: <defaults>
</compile_context>

<pallas_src>
import functools

import jax
import jax.numpy as jnp
from jax.experimental import pallas as pl
from jax.experimental.pallas import tpu as pltpu

HS = 128  # hidden size hard-coded in the PyTorch module


def policy_net_kernel(xcat_ref, wpre_ref, bpre_ref, w1_ref, bfc_ref, w2_ref,
                      wa_ref, ba_ref, wb_ref, bb_ref, out_ref, *, S):
    f32 = jnp.float32
    bf16 = jnp.bfloat16

    # Stage 1: one matmul builds the whole (B, conv_out_padded) slab that the
    # PyTorch code gets from [base_row | base_col | x[1]/1e4] flatten+concat.
    pre = jnp.dot(xcat_ref[...], wpre_ref[...], preferred_element_type=f32)
    act = jnp.maximum(pre + bpre_ref[...], 0.0)                # fc[0] = ReLU

    # fc: Linear(conv_out, 128) -> ReLU -> Linear(128, 128)
    h1 = jnp.dot(act.astype(bf16), w1_ref[...], preferred_element_type=f32)
    h1 = jnp.maximum(h1 + bfc_ref[0:1, :], 0.0)
    out_fc = jnp.dot(h1.astype(bf16), w2_ref[...], preferred_element_type=f32)
    out_fc = out_fc + bfc_ref[1:2, :]

    # Every policy head starts with ReLU(out_fc); compute it once, then run all
    # heads' first Linear as a single (B,128) @ (128, S*128) matmul.
    hr = jnp.maximum(out_fc, 0.0)
    ha = jnp.dot(hr.astype(bf16), wa_ref[...], preferred_element_type=f32)
    ha = jnp.maximum(ha + ba_ref[...], 0.0)                    # (B, S*128)

    # Per-head output projection + softmax over the processor axis.
    for s in range(S):
        ha_s = ha[:, s * HS:(s + 1) * HS]                      # 128-aligned lane slice
        logits = jnp.dot(ha_s.astype(bf16), wb_ref[s],
                         preferred_element_type=f32) + bb_ref[s]
        m = jnp.max(logits, axis=-1, keepdims=True)
        e = jnp.exp(logits - m)
        denom = jnp.sum(e, axis=-1, keepdims=True)
        out_ref[s] = e * pl.reciprocal(denom, approx=True)     # softmax(dim=1)


def policy_net_forward(x0_nchw, x1, kp):
    """x0_nchw: (B, 1, P, A) float32, x1: (B, 2*num_subtasks) float32."""
    B = x0_nchw.shape[0]
    S, _, P = kp["wb"].shape
    x = x0_nchw[:, 0]                                          # (B, P, A)
    xrow = x.reshape(B, -1)                                    # flat index p*A + a
    xcol = jnp.transpose(x, (0, 2, 1)).reshape(B, -1)          # flat index a*P + p
    xcat = jnp.concatenate([xrow, xcol, x1], axis=1).astype(jnp.float32)

    inputs = (xcat, kp["wpre"], kp["bpre"], kp["w1"], kp["bfc"], kp["w2"],
              kp["wa"], kp["ba"], kp["wb"], kp["bb"])
    vmem = pl.BlockSpec(memory_space=pltpu.MemorySpace.VMEM)
    # TODO(synk): if batch grows large, add a batch grid (block ~256) with
    # weights given constant index_maps and dimension_semantics=("parallel",)
    # to shard across v7x's two TensorCores; not needed at B=2.
    out = pl.pallas_call(
        functools.partial(policy_net_kernel, S=S),
        out_shape=jax.ShapeDtypeStruct((S, B, P), jnp.float32),
        in_specs=[vmem] * len(inputs),
        out_specs=vmem,
    )(*inputs)
    return [out[s] for s in range(S)]   # mirror PyTorch's list-of-heads output


def init_torch_like_params(key, P, A, S):
    """Deterministic synthetic parameters with the PyTorch shapes."""
    conv_out = HS * P + HS * A + 2 * S
    ks = jax.random.split(key, 12)
    scale = 0.05
    n = jax.random.normal
    return {
        # Conv2d(1, 128, (1, A)) / Conv2d(1, 128, (P, 1))
        "w_row": scale * n(ks[0], (HS, 1, 1, A), jnp.float32),
        "b_row": scale * n(ks[1], (HS,), jnp.float32),
        "w_col": scale * n(ks[2], (HS, 1, P, 1), jnp.float32),
        "b_col": scale * n(ks[3], (HS,), jnp.float32),
        # fc: Linear(conv_out, 128), Linear(128, 128)
        "w1": scale * n(ks[4], (HS, conv_out), jnp.float32),
        "b1": scale * n(ks[5], (HS,), jnp.float32),
        "w2": scale * n(ks[6], (HS, HS), jnp.float32),
        "b2": scale * n(ks[7], (HS,), jnp.float32),
        # policy heads: S x [Linear(128,128), Linear(128,P)]
        "wa": scale * n(ks[8], (S, HS, HS), jnp.float32),
        "ba": scale * n(ks[9], (S, HS), jnp.float32),
        "wb": scale * n(ks[10], (S, P, HS), jnp.float32),
        "bb": scale * n(ks[11], (S, P), jnp.float32),
    }


def to_kernel_params(tp, P, A, S):
    """Reorder/fuse PyTorch-shaped params into the kernel layouts (plain JAX glue)."""
    hs = HS
    inv = jnp.float32(1e-4)                                    # the /10000 scaling

    wr = tp["w_row"][:, 0, 0, :].T * inv                       # (A, hs), scale folded in
    wc = tp["w_col"][:, 0, :, 0].T * inv                       # (P, hs)

    conv_out = hs * P + hs * A + 2 * S
    co_pad = ((conv_out + 127) // 128) * 128                   # lane-align the slab

    # Block-diagonal Wpre: xcat (B, P*A + A*P + 2S) -> conv_out slab.
    row_blk = jnp.einsum("pq,ac->paqc", jnp.eye(P, dtype=jnp.float32), wr)
    row_blk = row_blk.reshape(P * A, P * hs)                   # rows p*A+a, cols p*hs+c
    col_blk = jnp.einsum("ab,pc->apbc", jnp.eye(A, dtype=jnp.float32), wc)
    col_blk = col_blk.reshape(A * P, A * hs)                   # rows a*P+p, cols a*hs+c
    x1_blk = jnp.eye(2 * S, dtype=jnp.float32) * inv

    n_in = P * A + A * P + 2 * S
    wpre = jnp.zeros((n_in, co_pad), jnp.float32)
    wpre = wpre.at[:P * A, :P * hs].set(row_blk)
    wpre = wpre.at[P * A:P * A + A * P, P * hs:hs * (P + A)].set(col_blk)
    wpre = wpre.at[P * A + A * P:, hs * (P + A):conv_out].set(x1_blk)

    bpre = jnp.zeros((1, co_pad), jnp.float32)
    bpre = bpre.at[0, :P * hs].set(jnp.tile(tp["b_row"], P))
    bpre = bpre.at[0, P * hs:hs * (P + A)].set(jnp.tile(tp["b_col"], A))

    # fc Linear(conv_out, hs): reorder its columns (PyTorch flatten is channel
    # major, c*P+p / c*A+a) to match the slab layout (p*hs+c / a*hs+c), then pad.
    w1 = tp["w1"]
    w1r = jnp.transpose(w1[:, :hs * P].reshape(hs, hs, P), (2, 1, 0)).reshape(P * hs, hs)
    w1c = jnp.transpose(w1[:, hs * P:hs * (P + A)].reshape(hs, hs, A), (2, 1, 0)).reshape(A * hs, hs)
    w1x = w1[:, hs * (P + A):].T                               # (2S, hs), no scale here
    w1full = jnp.zeros((co_pad, hs), jnp.float32)
    w1full = w1full.at[:conv_out, :].set(jnp.concatenate([w1r, w1c, w1x], axis=0))

    # Policy heads: first Linear of all heads batched into one weight.
    wa = jnp.concatenate([tp["wa"][s].T for s in range(S)], axis=1)   # (hs, S*hs)
    ba = tp["ba"].reshape(1, S * hs)
    wb = jnp.stack([tp["wb"][s].T for s in range(S)], axis=0)         # (S, hs, P)
    bb = tp["bb"].reshape(S, 1, P)

    return {
        "wpre": wpre, "bpre": bpre,
        "w1": w1full.astype(jnp.bfloat16),
        "bfc": jnp.stack([tp["b1"], tp["b2"]], axis=0),               # (2, hs)
        "w2": tp["w2"].T.astype(jnp.bfloat16),
        "wa": wa.astype(jnp.bfloat16), "ba": ba,
        "wb": wb.astype(jnp.bfloat16), "bb": bb,
    }


def reference_forward(x0_nchw, x1, tp):
    """Pure-JAX mirror of PolicyNet_First.forward (f32 throughout)."""
    x0 = x0_nchw / 1e4
    x1s = x1 / 1e4
    x = x0[:, 0]                                               # (B, P, A)
    B = x.shape[0]
    S = tp["wa"].shape[0]
    row = jnp.einsum("bpa,ca->bcp", x, tp["w_row"][:, 0, 0, :]) + tp["b_row"][None, :, None]
    col = jnp.einsum("bpa,cp->bca", x, tp["w_col"][:, 0, :, 0]) + tp["b_col"][None, :, None]
    conv_out = jnp.concatenate([row.reshape(B, -1), col.reshape(B, -1), x1s], axis=1)
    h = jnp.maximum(conv_out, 0.0)
    h = jnp.maximum(h @ tp["w1"].T + tp["b1"], 0.0)
    out_fc = h @ tp["w2"].T + tp["b2"]
    outs = []
    for s in range(S):
        g = jnp.maximum(out_fc, 0.0)
        g = jnp.maximum(g @ tp["wa"][s].T + tp["ba"][s], 0.0)
        logits = g @ tp["wb"][s].T + tp["bb"][s]
        outs.append(jax.nn.softmax(logits, axis=1))
    return outs


if __name__ == "__main__":
    B, P, A, S = 2, 4, 6, 3       # batch, num_processors, num_attributes, num_subtasks
    key = jax.random.PRNGKey(0)
    k_x0, k_x1, k_p = jax.random.split(key, 3)

    # PyTorch-style inputs (the module divides by 10000 internally).
    x0_nchw = 1e4 * jax.random.normal(k_x0, (B, 1, P, A), jnp.float32)
    x1 = 1e4 * jax.random.normal(k_x1, (B, 2 * S), jnp.float32)

    torch_params = init_torch_like_params(k_p, P, A, S)
    kparams = to_kernel_params(torch_params, P, A, S)

    outs = policy_net_forward(x0_nchw, x1, kparams)
    outs = jax.block_until_ready(outs)

    refs = reference_forward(x0_nchw, x1, torch_params)
    assert len(outs) == S
    for s in range(S):
        assert outs[s].shape == (B, P)
        assert jnp.allclose(outs[s], refs[s], rtol=2e-2, atol=2e-2), (s, outs[s], refs[s])

    print("KERNEL_OK")
</pallas_src>

<mosaic_0001>
module attributes {stable_mosaic.version = 11 : i64} {
  func.func @policy_net_kernel(%arg0: memref<2x54xf32, #tpu.memory_space<vmem>>, %arg1: memref<54x1408xf32, #tpu.memory_space<vmem>>, %arg2: memref<1x1408xf32, #tpu.memory_space<vmem>>, %arg3: memref<1408x128xbf16, #tpu.memory_space<vmem>>, %arg4: memref<2x128xf32, #tpu.memory_space<vmem>>, %arg5: memref<128x128xbf16, #tpu.memory_space<vmem>>, %arg6: memref<128x384xbf16, #tpu.memory_space<vmem>>, %arg7: memref<1x384xf32, #tpu.memory_space<vmem>>, %arg8: memref<3x128x4xbf16, #tpu.memory_space<vmem>>, %arg9: memref<3x1x4xf32, #tpu.memory_space<vmem>>, %arg10: memref<3x2x4xf32, #tpu.memory_space<vmem>>) attributes {dimension_semantics = [], scalar_prefetch = 0 : i64, scratch_operands = 0 : i64, tpu.core_type = #tpu.core_type<tc>} {
    %c0 = arith.constant 0 : index
    %c0_0 = arith.constant 0 : index
    %0 = vector.load %arg0[%c0, %c0_0] : memref<2x54xf32, #tpu.memory_space<vmem>>, vector<2x54xf32>
    %c0_1 = arith.constant 0 : index
    %c0_2 = arith.constant 0 : index
    %1 = vector.load %arg1[%c0_1, %c0_2] : memref<54x1408xf32, #tpu.memory_space<vmem>>, vector<54x1408xf32>
    %cst = arith.constant dense<0.000000e+00> : vector<2x1408xf32>
    %2 = tpu.matmul %0, %1, %cst {dimension_numbers = #tpu.dot_dimension_numbers<[1], [0], [0], [1], [0, 0, 1, 1], [], []>} : vector<2x54xf32>, vector<54x1408xf32>, vector<2x1408xf32> -> vector<2x1408xf32>
    %c0_3 = arith.constant 0 : index
    %c0_4 = arith.constant 0 : index
    %3 = vector.load %arg2[%c0_3, %c0_4] : memref<1x1408xf32, #tpu.memory_space<vmem>>, vector<1x1408xf32>
    %4 = vector.broadcast %3 : vector<1x1408xf32> to vector<2x1408xf32>
    %5 = arith.addf %2, %4 : vector<2x1408xf32>
    %cst_5 = arith.constant 0.000000e+00 : f32
    %6 = vector.broadcast %cst_5 : f32 to vector<2x1408xf32>
    %7 = arith.maximumf %5, %6 : vector<2x1408xf32>
    %8 = arith.truncf %7 : vector<2x1408xf32> to vector<2x1408xbf16>
    %c0_6 = arith.constant 0 : index
    %c0_7 = arith.constant 0 : index
    %9 = vector.load %arg3[%c0_6, %c0_7] : memref<1408x128xbf16, #tpu.memory_space<vmem>>, vector<1408x128xbf16>
    %cst_8 = arith.constant dense<0.000000e+00> : vector<2x128xf32>
    %10 = tpu.matmul %8, %9, %cst_8 {dimension_numbers = #tpu.dot_dimension_numbers<[1], [0], [0], [1], [0, 0, 1, 1], [], []>} : vector<2x1408xbf16>, vector<1408x128xbf16>, vector<2x128xf32> -> vector<2x128xf32>
    %c0_9 = arith.constant 0 : index
    %c0_10 = arith.constant 0 : index
    %11 = vector.load %arg4[%c0_9, %c0_10] : memref<2x128xf32, #tpu.memory_space<vmem>>, vector<1x128xf32>
    %12 = vector.broadcast %11 : vector<1x128xf32> to vector<2x128xf32>
    %13 = arith.addf %10, %12 : vector<2x128xf32>
    %cst_11 = arith.constant 0.000000e+00 : f32
    %14 = vector.broadcast %cst_11 : f32 to vector<2x128xf32>
    %15 = arith.maximumf %13, %14 : vector<2x128xf32>
    %16 = arith.truncf %15 : vector<2x128xf32> to vector<2x128xbf16>
    %c0_12 = arith.constant 0 : index
    %c0_13 = arith.constant 0 : index
    %17 = vector.load %arg5[%c0_12, %c0_13] : memref<128x128xbf16, #tpu.memory_space<vmem>>, vector<128x128xbf16>
    %cst_14 = arith.constant dense<0.000000e+00> : vector<2x128xf32>
    %18 = tpu.matmul %16, %17, %cst_14 {dimension_numbers = #tpu.dot_dimension_numbers<[1], [0], [0], [1], [0, 0, 1, 1], [], []>} : vector<2x128xbf16>, vector<128x128xbf16>, vector<2x128xf32> -> vector<2x128xf32>
    %c1 = arith.constant 1 : index
    %c0_15 = arith.constant 0 : index
    %19 = vector.load %arg4[%c1, %c0_15] : memref<2x128xf32, #tpu.memory_space<vmem>>, vector<1x128xf32>
    %20 = vector.broadcast %19 : vector<1x128xf32> to vector<2x128xf32>
    %21 = arith.addf %18, %20 : vector<2x128xf32>
    %cst_16 = arith.constant 0.000000e+00 : f32
    %22 = vector.broadcast %cst_16 : f32 to vector<2x128xf32>
    %23 = arith.maximumf %21, %22 : vector<2x128xf32>
    %24 = arith.truncf %23 : vector<2x128xf32> to vector<2x128xbf16>
    %c0_17 = arith.constant 0 : index
    %c0_18 = arith.constant 0 : index
    %25 = vector.load %arg6[%c0_17, %c0_18] : memref<128x384xbf16, #tpu.memory_space<vmem>>, vector<128x384xbf16>
    %cst_19 = arith.constant dense<0.000000e+00> : vector<2x384xf32>
    %26 = tpu.matmul %24, %25, %cst_19 {dimension_numbers = #tpu.dot_dimension_numbers<[1], [0], [0], [1], [0, 0, 1, 1], [], []>} : vector<2x128xbf16>, vector<128x384xbf16>, vector<2x384xf32> -> vector<2x384xf32>
    %c0_20 = arith.constant 0 : index
    %c0_21 = arith.constant 0 : index
    %27 = vector.load %arg7[%c0_20, %c0_21] : memref<1x384xf32, #tpu.memory_space<vmem>>, vector<1x384xf32>
    %28 = vector.broadcast %27 : vector<1x384xf32> to vector<2x384xf32>
    %29 = arith.addf %26, %28 : vector<2x384xf32>
    %cst_22 = arith.constant 0.000000e+00 : f32
    %30 = vector.broadcast %cst_22 : f32 to vector<2x384xf32>
    %31 = arith.maximumf %29, %30 : vector<2x384xf32>
    %32 = vector.extract_strided_slice %31 {offsets = [0, 0], sizes = [2, 128], strides = [1, 1]} : vector<2x384xf32> to vector<2x128xf32>
    %33 = arith.truncf %32 : vector<2x128xf32> to vector<2x128xbf16>
    %c0_23 = arith.constant 0 : index
    %c0_24 = arith.constant 0 : index
    %c0_25 = arith.constant 0 : index
    %34 = vector.load %arg8[%c0_23, %c0_24, %c0_25] : memref<3x128x4xbf16, #tpu.memory_space<vmem>>, vector<1x128x4xbf16>
    %35 = vector.shape_cast %34 : vector<1x128x4xbf16> to vector<128x4xbf16>
    %cst_26 = arith.constant dense<0.000000e+00> : vector<2x4xf32>
    %36 = tpu.matmul %33, %35, %cst_26 {dimension_numbers = #tpu.dot_dimension_numbers<[1], [0], [0], [1], [0, 0, 1, 1], [], []>} : vector<2x128xbf16>, vector<128x4xbf16>, vector<2x4xf32> -> vector<2x4xf32>
    %c0_27 = arith.constant 0 : index
    %c0_28 = arith.constant 0 : index
    %c0_29 = arith.constant 0 : index
    %37 = vector.load %arg9[%c0_27, %c0_28, %c0_29] : memref<3x1x4xf32, #tpu.memory_space<vmem>>, vector<1x1x4xf32>
    %38 = vector.shape_cast %37 : vector<1x1x4xf32> to vector<1x4xf32>
    %39 = vector.broadcast %38 : vector<1x4xf32> to vector<2x4xf32>
    %40 = arith.addf %36, %39 : vector<2x4xf32>
    %cst_30 = arith.constant dense<0xFF800000> : vector<2xf32>
    %41 = vector.multi_reduction <maximumf>, %40, %cst_30 [1] : vector<2x4xf32> to vector<2xf32>
    %42 = vector.shape_cast %41 : vector<2xf32> to vector<2x1xf32>
    %43 = vector.broadcast %42 : vector<2x1xf32> to vector<2x4xf32>
    %44 = arith.subf %40, %43 : vector<2x4xf32>
    %45 = math.exp %44 : vector<2x4xf32>
    %cst_31 = arith.constant dense<0.000000e+00> : vector<2xf32>
    %46 = vector.multi_reduction <add>, %45, %cst_31 [1] : vector<2x4xf32> to vector<2xf32>
    %47 = vector.shape_cast %46 : vector<2xf32> to vector<2x1xf32>
    %48 = tpu.reciprocal %47 {approx = true} : vector<2x1xf32> -> vector<2x1xf32>
    %49 = vector.broadcast %48 : vector<2x1xf32> to vector<2x4xf32>
    %50 = arith.mulf %45, %49 : vector<2x4xf32>
    %c0_32 = arith.constant 0 : index
    %c0_33 = arith.constant 0 : index
    %c0_34 = arith.constant 0 : index
    %51 = vector.load %arg10[%c0_32, %c0_33, %c0_34] : memref<3x2x4xf32, #tpu.memory_space<vmem>>, vector<1x2x4xf32>
    %52 = vector.shape_cast %51 : vector<1x2x4xf32> to vector<2x4xf32>
    %53 = vector.shape_cast %50 : vector<2x4xf32> to vector<1x2x4xf32>
    tpu.vector_store %arg10[%c0_32, %c0_33, %c0_34], %53 {strides = array<i32>} : memref<3x2x4xf32, #tpu.memory_space<vmem>>, vector<1x2x4xf32>,
    %54 = vector.extract_strided_slice %31 {offsets = [0, 128], sizes = [2, 128], strides = [1, 1]} : vector<2x384xf32> to vector<2x128xf32>
    %55 = arith.truncf %54 : vector<2x128xf32> to vector<2x128xbf16>
    %c1_35 = arith.constant 1 : index
    %c0_36 = arith.constant 0 : index
    %c0_37 = arith.constant 0 : index
    %56 = vector.load %arg8[%c1_35, %c0_36, %c0_37] : memref<3x128x4xbf16, #tpu.memory_space<vmem>>, vector<1x128x4xbf16>
    %57 = vector.shape_cast %56 : vector<1x128x4xbf16> to vector<128x4xbf16>
    %cst_38 = arith.constant dense<0.000000e+00> : vector<2x4xf32>
    %58 = tpu.matmul %55, %57, %cst_38 {dimension_numbers = #tpu.dot_dimension_numbers<[1], [0], [0], [1], [0, 0, 1, 1], [], []>} : vector<2x128xbf16>, vector<128x4xbf16>, vector<2x4xf32> -> vector<2x4xf32>
    %c1_39 = arith.constant 1 : index
    %c0_40 = arith.constant 0 : index
    %c0_41 = arith.constant 0 : index
    %59 = vector.load %arg9[%c1_39, %c0_40, %c0_41] : memref<3x1x4xf32, #tpu.memory_space<vmem>>, vector<1x1x4xf32>
    %60 = vector.shape_cast %59 : vector<1x1x4xf32> to vector<1x4xf32>
    %61 = vector.broadcast %60 : vector<1x4xf32> to vector<2x4xf32>
    %62 = arith.addf %58, %61 : vector<2x4xf32>
    %cst_42 = arith.constant dense<0xFF800000> : vector<2xf32>
    %63 = vector.multi_reduction <maximumf>, %62, %cst_42 [1] : vector<2x4xf32> to vector<2xf32>
    %64 = vector.shape_cast %63 : vector<2xf32> to vector<2x1xf32>
    %65 = vector.broadcast %64 : vector<2x1xf32> to vector<2x4xf32>
    %66 = arith.subf %62, %65 : vector<2x4xf32>
    %67 = math.exp %66 : vector<2x4xf32>
    %cst_43 = arith.constant dense<0.000000e+00> : vector<2xf32>
    %68 = vector.multi_reduction <add>, %67, %cst_43 [1] : vector<2x4xf32> to vector<2xf32>
    %69 = vector.shape_cast %68 : vector<2xf32> to vector<2x1xf32>
    %70 = tpu.reciprocal %69 {approx = true} : vector<2x1xf32> -> vector<2x1xf32>
    %71 = vector.broadcast %70 : vector<2x1xf32> to vector<2x4xf32>
    %72 = arith.mulf %67, %71 : vector<2x4xf32>
    %c1_44 = arith.constant 1 : index
    %c0_45 = arith.constant 0 : index
    %c0_46 = arith.constant 0 : index
    %73 = vector.load %arg10[%c1_44, %c0_45, %c0_46] : memref<3x2x4xf32, #tpu.memory_space<vmem>>, vector<1x2x4xf32>
    %74 = vector.shape_cast %73 : vector<1x2x4xf32> to vector<2x4xf32>
    %75 = vector.shape_cast %72 : vector<2x4xf32> to vector<1x2x4xf32>
    tpu.vector_store %arg10[%c1_44, %c0_45, %c0_46], %75 {strides = array<i32>} : memref<3x2x4xf32, #tpu.memory_space<vmem>>, vector<1x2x4xf32>,
    %76 = vector.extract_strided_slice %31 {offsets = [0, 256], sizes = [2, 128], strides = [1, 1]} : vector<2x384xf32> to vector<2x128xf32>
    %77 = arith.truncf %76 : vector<2x128xf32> to vector<2x128xbf16>
    %c2 = arith.constant 2 : index
    %c0_47 = arith.constant 0 : index
    %c0_48 = arith.constant 0 : index
    %78 = vector.load %arg8[%c2, %c0_47, %c0_48] : memref<3x128x4xbf16, #tpu.memory_space<vmem>>, vector<1x128x4xbf16>
    %79 = vector.shape_cast %78 : vector<1x128x4xbf16> to vector<128x4xbf16>
    %cst_49 = arith.constant dense<0.000000e+00> : vector<2x4xf32>
    %80 = tpu.matmul %77, %79, %cst_49 {dimension_numbers = #tpu.dot_dimension_numbers<[1], [0], [0], [1], [0, 0, 1, 1], [], []>} : vector<2x128xbf16>, vector<128x4xbf16>, vector<2x4xf32> -> vector<2x4xf32>
    %c2_50 = arith.constant 2 : index
    %c0_51 = arith.constant 0 : index
    %c0_52 = arith.constant 0 : index
    %81 = vector.load %arg9[%c2_50, %c0_51, %c0_52] : memref<3x1x4xf32, #tpu.memory_space<vmem>>, vector<1x1x4xf32>
    %82 = vector.shape_cast %81 : vector<1x1x4xf32> to vector<1x4xf32>
    %83 = vector.broadcast %82 : vector<1x4xf32> to vector<2x4xf32>
    %84 = arith.addf %80, %83 : vector<2x4xf32>
    %cst_53 = arith.constant dense<0xFF800000> : vector<2xf32>
    %85 = vector.multi_reduction <maximumf>, %84, %cst_53 [1] : vector<2x4xf32> to vector<2xf32>
    %86 = vector.shape_cast %85 : vector<2xf32> to vector<2x1xf32>
    %87 = vector.broadcast %86 : vector<2x1xf32> to vector<2x4xf32>
    %88 = arith.subf %84, %87 : vector<2x4xf32>
    %89 = math.exp %88 : vector<2x4xf32>
    %cst_54 = arith.constant dense<0.000000e+00> : vector<2xf32>
    %90 = vector.multi_reduction <add>, %89, %cst_54 [1] : vector<2x4xf32> to vector<2xf32>
    %91 = vector.shape_cast %90 : vector<2xf32> to vector<2x1xf32>
    %92 = tpu.reciprocal %91 {approx = true} : vector<2x1xf32> -> vector<2x1xf32>
    %93 = vector.broadcast %92 : vector<2x1xf32> to vector<2x4xf32>
    %94 = arith.mulf %89, %93 : vector<2x4xf32>
    %c2_55 = arith.constant 2 : index
    %c0_56 = arith.constant 0 : index
    %c0_57 = arith.constant 0 : index
    %95 = vector.load %arg10[%c2_55, %c0_56, %c0_57] : memref<3x2x4xf32, #tpu.memory_space<vmem>>, vector<1x2x4xf32>
    %96 = vector.shape_cast %95 : vector<1x2x4xf32> to vector<2x4xf32>
    %97 = vector.shape_cast %94 : vector<2x4xf32> to vector<1x2x4xf32>
    tpu.vector_store %arg10[%c2_55, %c0_56, %c0_57], %97 {strides = array<i32>} : memref<3x2x4xf32, #tpu.memory_space<vmem>>, vector<1x2x4xf32>,
    return
  }
}

</mosaic_0001>

<llo_original>
// kernel: tpu_custom_call.1
$region0: #{tpu_custom_call.1}
  #allocation0 [shape = 'u32[]', space=smem, size = 0x4, offset = 0x4, fixed_abs, tag = 'smem constant byte address 0x4 - core index']
  #allocation1 [shape = 'u32[72,128]{1,0:T(1,128)}', space=vmem, size = 0x9000, scoped, tag = 'internal scratch']
  %s0 = inlined_call_operand.hbm [shape: f32[2,54], index: 0, kind: input, shape index: {}]
  %s1 = inlined_call_operand.hbm [shape: f32[54,1408], index: 1, kind: input, shape index: {}]
  %s2 = inlined_call_operand.hbm [shape: f32[1,1408], index: 2, kind: input, shape index: {}]
  %s3 = inlined_call_operand.hbm [shape: bf16[1408,128], index: 3, kind: input, shape index: {}]
  %s4 = inlined_call_operand.hbm [shape: f32[2,128], index: 4, kind: input, shape index: {}]
  %s5 = inlined_call_operand.hbm [shape: bf16[128,128], index: 5, kind: input, shape index: {}]
  %s6 = inlined_call_operand.vmem [shape: bf16[128,384], index: 6, kind: input, shape index: {}]
  %s7 = inlined_call_operand.vmem [shape: f32[1,384], index: 7, kind: input, shape index: {}]
  %s8 = inlined_call_operand.vmem [shape: bf16[3,128,4], index: 8, kind: input, shape index: {}]
  %s9 = inlined_call_operand.vmem [shape: f32[3,1,4], index: 9, kind: input, shape index: {}]
  %s10 = inlined_call_operand.hbm [shape: f32[3,2,4], index: 10, kind: output, shape index: {}]
  %s11 = sld [smem:[#allocation0]]
  $region74: #{tpu_custom_call.1} parent=0
    _
  %s13 = ssub.s32 1, %s11
  %s14 = scalar_select 0, %s13, %s11
  $region1: #{tpu_custom_call.1} parent=0
    #allocation2 [shape = 'u8[1024]{0}', space=vmem, size = 0x400, scoped, tag = 'input window, operand 0, single buffered']
    #allocation3 [shape = 's32[1]{0}', space=sflag, size = 0x4, scoped, tag = 'scoped memory for tpu_custom_call.1']
    #allocation4 [shape = 's32[1]{0}', space=sflag, size = 0x4, scoped, tag = 'scoped memory for tpu_custom_call.1']
    #allocation5 [shape = 'u8[315392]{0}', space=vmem, size = 0x4d000, scoped, tag = 'input window, operand 1, single buffered']
    #allocation6 [shape = 's32[1]{0}', space=sflag, size = 0x4, scoped, tag = 'scoped memory for tpu_custom_call.1']
    #allocation7 [shape = 'u8[5632]{0}', space=vmem, size = 0x1800, scoped, tag = 'input window, operand 2, single buffered']
    #allocation8 [shape = 'u8[360448]{0}', space=vmem, size = 0x58000, scoped, tag = 'input window, operand 3, single buffered']
    #allocation9 [shape = 's32[1]{0}', space=sflag, size = 0x4, scoped, tag = 'scoped memory for tpu_custom_call.1']
    #allocation10 [shape = 'u8[1024]{0}', space=vmem, size = 0x400, scoped, tag = 'input window, operand 4, single buffered']
    #allocation11 [shape = 'u8[32768]{0}', space=vmem, size = 0x8000, scoped, tag = 'input window, operand 5, single buffered']
    #allocation12 [shape = 's32[1]{0}', space=sflag, size = 0x4, scoped, tag = 'scoped memory for tpu_custom_call.1']
    #allocation13 [shape = 'u8[3072]{0}', space=vmem, size = 0xc00, scoped, tag = 'output window, operand 0, single buffered']
    %15 = vsyncpa [#allocation3], 0
    %16 = vsyncpa [#allocation6], 0
    %17 = vsyncpa [#allocation9], 0
    %18 = vsyncpa [#allocation12], 0
    %19 = vsyncpa [#allocation4], 0
    // Predicated region
    $region2: #{tpu_custom_call.1} parent=1 // pred_check
      _
    $region3: #{tpu_custom_call.1} parent=1 // pred_check_branch
      %21 = sbr.rel (0) target = $region5
    $region4: #{tpu_custom_call.1} parent=1 // pred_region
      %23 = vsyncadd [#allocation3], 0
      %s25 = sshll.u32 %s0, 4
      %s26 = int_to_ptr.hbm [resolvable:$true] %s25
      %s27 = sshll.u32 [#allocation2], 4
      %s28 = int_to_ptr.vmem [resolvable:$true] %s27
      %30 = dma.hbm_to_vmem [thread:$0]  %s26, 32, %s28, [#allocation3]
    $region5: #{tpu_custom_call.1} parent=1 // pred_fallthru
      _
    // Predicated region
    $region6: #{tpu_custom_call.1} parent=1 // pred_check
      _
    $region7: #{tpu_custom_call.1} parent=1 // pred_check_branch
      %32 = sbr.rel (0) target = $region9
    $region8: #{tpu_custom_call.1} parent=1 // pred_region
      %34 = vsyncadd [#allocation6], 0
      %s35 = sshll.u32 %s1, 4
      %s36 = int_to_ptr.hbm [resolvable:$true] %s35
      %s37 = sshll.u32 [#allocation5], 4
      %s38 = int_to_ptr.vmem [resolvable:$true] %s37
      %43 = dma.hbm_to_vmem [thread:$0]  %s36, 9856, %s38, [#allocation6], 1408, 1408, 88
    $region9: #{tpu_custom_call.1} parent=1 // pred_fallthru
      _
    // Predicated region
    $region10: #{tpu_custom_call.1} parent=1 // pred_check
      _
    $region11: #{tpu_custom_call.1} parent=1 // pred_check_branch
      %45 = sbr.rel (0) target = $region13
    $region12: #{tpu_custom_call.1} parent=1 // pred_region
      %47 = vsyncadd [#allocation6], 0
      %s49 = sshll.u32 %s2, 4
      %s50 = int_to_ptr.hbm [resolvable:$true] %s49
      %s51 = sshll.u32 [#allocation7], 4
      %s52 = int_to_ptr.vmem [resolvable:$true] %s51
      %54 = dma.hbm_to_vmem [thread:$0]  %s50, 176, %s52, [#allocation6]
    $region13: #{tpu_custom_call.1} parent=1 // pred_fallthru
      _
    // Predicated region
    $region14: #{tpu_custom_call.1} parent=1 // pred_check
      _
    $region15: #{tpu_custom_call.1} parent=1 // pred_check_branch
      %56 = sbr.rel (0) target = $region17
    $region16: #{tpu_custom_call.1} parent=1 // pred_region
      %58 = vsyncadd [#allocation9], 0
      %s59 = sshll.u32 %s3, 4
      %s60 = int_to_ptr.hbm [resolvable:$true] %s59
      %s61 = sshll.u32 [#allocation8], 4
      %s62 = int_to_ptr.vmem [resolvable:$true] %s61
      %67 = dma.hbm_to_vmem [thread:$0]  %s60, 11264, %s62, [#allocation9], 64, 64, 4
    $region17: #{tpu_custom_call.1} parent=1 // pred_fallthru
      _
    // Predicated region
    $region18: #{tpu_custom_call.1} parent=1 // pred_check
      _
    $region19: #{tpu_custom_call.1} parent=1 // pred_check_branch
      %69 = sbr.rel (0) target = $region21
    $region20: #{tpu_custom_call.1} parent=1 // pred_region
      %71 = vsyncadd [#allocation9], 0
      %s73 = sshll.u32 %s4, 4
      %s74 = int_to_ptr.hbm [resolvable:$true] %s73
      %s75 = sshll.u32 [#allocation10], 4
      %s76 = int_to_ptr.vmem [resolvable:$true] %s75
      %78 = dma.hbm_to_vmem [thread:$0]  %s74, 32, %s76, [#allocation9]
    $region21: #{tpu_custom_call.1} parent=1 // pred_fallthru
      _
    // Predicated region
    $region22: #{tpu_custom_call.1} parent=1 // pred_check
      _
    $region23: #{tpu_custom_call.1} parent=1 // pred_check_branch
      %80 = sbr.rel (0) target = $region25
    $region24: #{tpu_custom_call.1} parent=1 // pred_region
      %82 = vsyncadd [#allocation12], 0
      %s83 = sshll.u32 %s5, 4
      %s84 = int_to_ptr.hbm [resolvable:$true] %s83
      %s85 = sshll.u32 [#allocation11], 4
      %s86 = int_to_ptr.vmem [resolvable:$true] %s85
      %91 = dma.hbm_to_vmem [thread:$0]  %s84, 1024, %s86, [#allocation12], 64, 64, 4
    $region25: #{tpu_custom_call.1} parent=1 // pred_fallthru
      _
    // Predicated region
    $region26: #{tpu_custom_call.1} parent=1 // pred_check
      _
    $region27: #{tpu_custom_call.1} parent=1 // pred_check_branch
      %93 = sbr.rel (0) target = $region29
    $region28: #{tpu_custom_call.1} parent=1 // pred_region
      _
    $region29: #{tpu_custom_call.1} parent=1 // pred_fallthru
      _
    // Predicated region
    $region30: #{tpu_custom_call.1} parent=1 // pred_check
      _
    $region31: #{tpu_custom_call.1} parent=1 // pred_check_branch
      %95 = sbr.rel (0) target = $region33
    $region32: #{tpu_custom_call.1} parent=1 // pred_region
      _
    $region33: #{tpu_custom_call.1} parent=1 // pred_fallthru
      _
    // Predicated region
    $region34: #{tpu_custom_call.1} parent=1 // pred_check
      _
    $region35: #{tpu_custom_call.1} parent=1 // pred_check_branch
      %97 = sbr.rel (0) target = $region37
    $region36: #{tpu_custom_call.1} parent=1 // pred_region
      _
    $region37: #{tpu_custom_call.1} parent=1 // pred_fallthru
      _
    // Predicated region
    $region38: #{tpu_custom_call.1} parent=1 // pred_check
      _
    $region39: #{tpu_custom_call.1} parent=1 // pred_check_branch
      %99 = sbr.rel (0) target = $region41
    $region40: #{tpu_custom_call.1} parent=1 // pred_region
      _
    $region41: #{tpu_custom_call.1} parent=1 // pred_fallthru
      _
    // Predicated region
    $region42: #{tpu_custom_call.1} parent=1 // pred_check
      _
    $region43: #{tpu_custom_call.1} parent=1 // pred_check_branch
      %101 = sbr.rel (0) target = $region45
    $region44: #{tpu_custom_call.1} parent=1 // pred_region
      %103 = dma.done [#allocation3], 32
    $region45: #{tpu_custom_call.1} parent=1 // pred_fallthru
      _
    // Predicated region
    $region46: #{tpu_custom_call.1} parent=1 // pred_check
      _
    $region47: #{tpu_custom_call.1} parent=1 // pred_check_branch
      %105 = sbr.rel (0) target = $region49
    $region48: #{tpu_custom_call.1} parent=1 // pred_region
      %107 = dma.done [#allocation6], 9856
    $region49: #{tpu_custom_call.1} parent=1 // pred_fallthru
      _
    // Predicated region
    $region50: #{tpu_custom_call.1} parent=1 // pred_check
      _
    $region51: #{tpu_custom_call.1} parent=1 // pred_check_branch
      %109 = sbr.rel (0) target = $region53
    $region52: #{tpu_custom_call.1} parent=1 // pred_region
      %111 = dma.done [#allocation6], 176
    $region53: #{tpu_custom_call.1} parent=1 // pred_fallthru
      _
    // Predicated region
    $region54: #{tpu_custom_call.1} parent=1 // pred_check
      _
    $region55: #{tpu_custom_call.1} parent=1 // pred_check_branch
      %113 = sbr.rel (0) target = $region57
    $region56: #{tpu_custom_call.1} parent=1 // pred_region
      %115 = dma.done [#allocation9], 11264
    $region57: #{tpu_custom_call.1} parent=1 // pred_fallthru
      _
    // Predicated region
    $region58: #{tpu_custom_call.1} parent=1 // pred_check
      _
    $region59: #{tpu_custom_call.1} parent=1 // pred_check_branch
      %117 = sbr.rel (0) target = $region61
    $region60: #{tpu_custom_call.1} parent=1 // pred_region
      %119 = dma.done [#allocation9], 32
    $region61: #{tpu_custom_call.1} parent=1 // pred_fallthru
      _
    // Predicated region
    $region62: #{tpu_custom_call.1} parent=1 // pred_check
      _
    $region63: #{tpu_custom_call.1} parent=1 // pred_check_branch
      %121 = sbr.rel (0) target = $region65
    $region64: #{tpu_custom_call.1} parent=1 // pred_region
      %123 = dma.done [#allocation12], 1024
    $region65: #{tpu_custom_call.1} parent=1 // pred_fallthru
      _
    %v124 = vld [vmem:[#allocation2] sm:$0x3]
    %v125 = vld [vmem:[#allocation5] sm:$0xff]
    %v126 = vld [vmem:[#allocation5 + $0x8] sm:$0xff]
    %v127 = vld [vmem:[#allocation5 + $0x10] sm:$0xff]
    %v128 = vld [vmem:[#allocation5 + $0x18] sm:$0xff]
    %v129 = vld [vmem:[#allocation5 + $0x20] sm:$0xff]
    %v130 = vld [vmem:[#allocation5 + $0x28] sm:$0xff]
    %v131 = vld [vmem:[#allocation5 + $0x30] sm:$0xff]
    %v132 = vld [vmem:[#allocation5 + $0x38] sm:$0xff]
    %v133 = vld [vmem:[#allocation5 + $0x40] sm:$0xff]
    %v134 = vld [vmem:[#allocation5 + $0x48] sm:$0xff]
    %v135 = vld [vmem:[#allocation5 + $0x50] sm:$0xff]
    %v136 = vld [vmem:[#allocation5 + $0x58] sm:$0xff]
    %v137 = vld [vmem:[#allocation5 + $0x60] sm:$0xff]
    %v138 = vld [vmem:[#allocation5 + $0x68] sm:$0xff]
    %v139 = vld [vmem:[#allocation5 + $0x70] sm:$0xff]
    %v140 = vld [vmem:[#allocation5 + $0x78] sm:$0xff]
    %v141 = vld [vmem:[#allocation5 + $0x80] sm:$0xff]
    %v142 = vld [vmem:[#allocation5 + $0x88] sm:$0xff]
    %v143 = vld [vmem:[#allocation5 + $0x90] sm:$0xff]
    %v144 = vld [vmem:[#allocation5 + $0x98] sm:$0xff]
    %v145 = vld [vmem:[#allocation5 + $0xa0] sm:$0xff]
    %v146 = vld [vmem:[#allocation5 + $0xa8] sm:$0xff]
    %v147 = vld [vmem:[#allocation5 + $0xb0] sm:$0xff]
    %v148 = vld [vmem:[#allocation5 + $0xb8] sm:$0xff]
    %v149 = vld [vmem:[#allocation5 + $0xc0] sm:$0xff]
    %v150 = vld [vmem:[#allocation5 + $0xc8] sm:$0xff]
    %v151 = vld [vmem:[#allocation5 + $0xd0] sm:$0xff]
    %v152 = vld [vmem:[#allocation5 + $0xd8] sm:$0xff]
    %v153 = vld [vmem:[#allocation5 + $0xe0] sm:$0xff]
    %v154 = vld [vmem:[#allocation5 + $0xe8] sm:$0xff]
    %v155 = vld [vmem:[#allocation5 + $0xf0] sm:$0xff]
    %v156 = vld [vmem:[#allocation5 + $0xf8] sm:$0xff]
    %v157 = vld [vmem:[#allocation5 + $0x100] sm:$0xff]
    %v158 = vld [vmem:[#allocation5 + $0x108] sm:$0xff]
    %v159 = vld [vmem:[#allocation5 + $0x110] sm:$0xff]
    %v160 = vld [vmem:[#allocation5 + $0x118] sm:$0xff]
    %v161 = vld [vmem:[#allocation5 + $0x120] sm:$0xff]
    %v162 = vld [vmem:[#allocation5 + $0x128] sm:$0xff]
    %v163 = vld [vmem:[#allocation5 + $0x130] sm:$0xff]
    %v164 = vld [vmem:[#allocation5 + $0x138] sm:$0xff]
    %v165 = vld [vmem:[#allocation5 + $0x140] sm:$0xff]
    %v166 = vld [vmem:[#allocation5 + $0x148] sm:$0xff]
    %v167 = vld [vmem:[#allocation5 + $0x150] sm:$0xff]
    %v168 = vld [vmem:[#allocation5 + $0x158] sm:$0xff]
    %v169 = vld [vmem:[#allocation5 + $0x160] sm:$0xff]
    %v170 = vld [vmem:[#allocation5 + $0x168] sm:$0xff]
    %v171 = vld [vmem:[#allocation5 + $0x170] sm:$0xff]
    %v172 = vld [vmem:[#allocation5 + $0x178] sm:$0xff]
    %v173 = vld [vmem:[#allocation5 + $0x180] sm:$0xff]
    %v174 = vld [vmem:[#allocation5 + $0x188] sm:$0xff]
    %v175 = vld [vmem:[#allocation5 + $0x190] sm:$0xff]
    %v176 = vld [vmem:[#allocation5 + $0x198] sm:$0xff]
    %v177 = vld [vmem:[#allocation5 + $0x1a0] sm:$0xff]
    %v178 = vld [vmem:[#allocation5 + $0x1a8] sm:$0xff]
    %v179 = vld [vmem:[#allocation5 + $0x1b0] sm:$0xff]
    %v180 = vld [vmem:[#allocation5 + $0x1b8] sm:$0xff]
    %v181 = vld [vmem:[#allocation5 + $0x1c0] sm:$0xff]
    %v182 = vld [vmem:[#allocation5 + $0x1c8] sm:$0xff]
    %v183 = vld [vmem:[#allocation5 + $0x1d0] sm:$0xff]
    %v184 = vld [vmem:[#allocation5 + $0x1d8] sm:$0xff]
    %v185 = vld [vmem:[#allocation5 + $0x1e0] sm:$0xff]
    %v186 = vld [vmem:[#allocation5 + $0x1e8] sm:$0xff]
    %v187 = vld [vmem:[#allocation5 + $0x1f0] sm:$0xff]
    %v188 = vld [vmem:[#allocation5 + $0x1f8] sm:$0xff]
    %v189 = vld [vmem:[#allocation5 + $0x200] sm:$0xff]
    %v190 = vld [vmem:[#allocation5 + $0x208] sm:$0xff]
    %v191 = vld [vmem:[#allocation5 + $0x210] sm:$0x3f]
    %v192 = vld [vmem:[#allocation5 + $0x218] sm:$0x3f]
    %v193 = vld [vmem:[#allocation5 + $0x220] sm:$0x3f]
    %v194 = vld [vmem:[#allocation5 + $0x228] sm:$0x3f]
    %v195 = vld [vmem:[#allocation5 + $0x230] sm:$0x3f]
    %v196 = vld [vmem:[#allocation5 + $0x238] sm:$0x3f]
    %v197 = vld [vmem:[#allocation5 + $0x240] sm:$0x3f]
    %v198 = vld [vmem:[#allocation5 + $0x248] sm:$0x3f]
    %v199 = vld [vmem:[#allocation5 + $0x250] sm:$0x3f]
    %v200 = vld [vmem:[#allocation5 + $0x258] sm:$0x3f]
    %v201 = vld [vmem:[#allocation5 + $0x260] sm:$0x3f]
    %v202 = vld [vmem:[#allocation7] sm:$0xff]
    %v203 = vld [vmem:[#allocation7 + $0x8] sm:$0x7]
    %v206 = vperm.slane %v202, 0
    %v207 = vperm.slane %v202, 1
    %v208 = vperm.slane %v202, 2
    %v209 = vperm.slane %v202, 3
    %v210 = vperm.slane %v202, 4
    %v211 = vperm.slane %v202, 5
    %v212 = vperm.slane %v202, 6
    %v213 = vperm.slane %v202, 7
    %v214 = vperm.slane %v203, 0
    %v215 = vperm.slane %v203, 1
    %v216 = vperm.slane %v203, 2
    %vm228 = vcmask 441344
    %v230 = vsel %vm228, %v124, 0
    %vm232 = vcmask 1045504
    %v234 = vsel %vm232, %v191, 0
    %v237 = vsel %vm232, %v192, 0
    %v240 = vsel %vm232, %v193, 0
    %v243 = vsel %vm232, %v194, 0
    %v246 = vsel %vm232, %v195, 0
    %v249 = vsel %vm232, %v196, 0
    %v252 = vsel %vm232, %v197, 0
    %v255 = vsel %vm232, %v198, 0
    %v258 = vsel %vm232, %v199, 0
    %v261 = vsel %vm232, %v200, 0
    %v264 = vsel %vm232, %v201, 0
    %266 = vmatpush.msra.mxu0 0.0
    %267 = vmatpush.msra.mxu0 0.0
    %268 = vmatpush.msra.mxu0 0.0
    %269 = vmatpush.msra.mxu0 0.0
    %270 = vmatpush.msra.mxu0 0.0
    %271 = vmatpush.msra.mxu0 0.0
    %272 = vmatpush.msra.mxu0 0.0
    %273 = vmatpush.msra.mxu0 0.0
    %274 = vmatpush.msra.mxu0 0.0
    %275 = vmatpush.msra.mxu0 %v234
    %276 = vmatpush.msra.mxu0 %v180
    %277 = vmatpush.msra.mxu0 %v169
    %278 = vmatpush.msra.mxu0 %v158
    %279 = vmatpush.msra.mxu0 %v147
    %280 = vmatpush.msra.mxu0 %v136
    %281 = vmatpush.msra.mxu0 %v125
    %282 = vmatmul.f32.gmra.mxu0 %v230
    %v283 = vpop.f32.mrf.mxu0
    %v284 = vadd.f32 %v206, %v283
    %285 = vdwg.mxu0
    %286 = vmatpush.msra.mxu0 0.0
    %287 = vmatpush.msra.mxu0 0.0
    %288 = vmatpush.msra.mxu0 0.0
    %289 = vmatpush.msra.mxu0 0.0
    %290 = vmatpush.msra.mxu0 0.0
    %291 = vmatpush.msra.mxu0 0.0
    %292 = vmatpush.msra.mxu0 0.0
    %293 = vmatpush.msra.mxu0 0.0
    %294 = vmatpush.msra.mxu0 0.0
    %295 = vmatpush.msra.mxu0 %v237
    %296 = vmatpush.msra.mxu0 %v181
    %297 = vmatpush.msra.mxu0 %v170
    %298 = vmatpush.msra.mxu0 %v159
    %299 = vmatpush.msra.mxu0 %v148
    %300 = vmatpush.msra.mxu0 %v137
    %301 = vmatpush.msra.mxu0 %v126
    %302 = vmatmul.f32.gmra.mxu0 %v230
    %v303 = vpop.f32.mrf.mxu0
    %v304 = vadd.f32 %v207, %v303
    %305 = vdwg.mxu0
    %306 = vmatpush.msra.mxu0 0.0
    %307 = vmatpush.msra.mxu0 0.0
    %308 = vmatpush.msra.mxu0 0.0
    %309 = vmatpush.msra.mxu0 0.0
    %310 = vmatpush.msra.mxu0 0.0
    %311 = vmatpush.msra.mxu0 0.0
    %312 = vmatpush.msra.mxu0 0.0
    %313 = vmatpush.msra.mxu0 0.0
    %314 = vmatpush.msra.mxu0 0.0
    %315 = vmatpush.msra.mxu0 %v240
    %316 = vmatpush.msra.mxu0 %v182
    %317 = vmatpush.msra.mxu0 %v171
    %318 = vmatpush.msra.mxu0 %v160
    %319 = vmatpush.msra.mxu0 %v149
    %320 = vmatpush.msra.mxu0 %v138
    %321 = vmatpush.msra.mxu0 %v127
    %322 = vmatmul.f32.gmra.mxu0 %v230
    %v323 = vpop.f32.mrf.mxu0
    %v324 = vadd.f32 %v208, %v323
    %325 = vdwg.mxu0
    %326 = vmatpush.msra.mxu0 0.0
    %327 = vmatpush.msra.mxu0 0.0
    %328 = vmatpush.msra.mxu0 0.0
    %329 = vmatpush.msra.mxu0 0.0
    %330 = vmatpush.msra.mxu0 0.0
    %331 = vmatpush.msra.mxu0 0.0
    %332 = vmatpush.msra.mxu0 0.0
    %333 = vmatpush.msra.mxu0 0.0
    %334 = vmatpush.msra.mxu0 0.0
    %335 = vmatpush.msra.mxu0 %v243
    %336 = vmatpush.msra.mxu0 %v183
    %337 = vmatpush.msra.mxu0 %v172
    %338 = vmatpush.msra.mxu0 %v161
    %339 = vmatpush.msra.mxu0 %v150
    %340 = vmatpush.msra.mxu0 %v139
    %341 = vmatpush.msra.mxu0 %v128
    %342 = vmatmul.f32.gmra.mxu0 %v230
    %v343 = vpop.f32.mrf.mxu0
    %v344 = vadd.f32 %v209, %v343
    %345 = vdwg.mxu0
    %346 = vmatpush.msra.mxu0 0.0
    %347 = vmatpush.msra.mxu0 0.0
    %348 = vmatpush.msra.mxu0 0.0
    %349 = vmatpush.msra.mxu0 0.0
    %350 = vmatpush.msra.mxu0 0.0
    %351 = vmatpush.msra.mxu0 0.0
    %352 = vmatpush.msra.mxu0 0.0
    %353 = vmatpush.msra.mxu0 0.0
    %354 = vmatpush.msra.mxu0 0.0
    %355 = vmatpush.msra.mxu0 %v246
    %356 = vmatpush.msra.mxu0 %v184
    %357 = vmatpush.msra.mxu0 %v173
    %358 = vmatpush.msra.mxu0 %v162
    %359 = vmatpush.msra.mxu0 %v151
    %360 = vmatpush.msra.mxu0 %v140
    %361 = vmatpush.msra.mxu0 %v129
    %362 = vmatmul.f32.gmra.mxu0 %v230
    %v363 = vpop.f32.mrf.mxu0
    %v364 = vadd.f32 %v210, %v363
    %365 = vdwg.mxu0
    %366 = vmatpush.msra.mxu0 0.0
    %367 = vmatpush.msra.mxu0 0.0
    %368 = vmatpush.msra.mxu0 0.0
    %369 = vmatpush.msra.mxu0 0.0
    %370 = vmatpush.msra.mxu0 0.0
    %371 = vmatpush.msra.mxu0 0.0
    %372 = vmatpush.msra.mxu0 0.0
    %373 = vmatpush.msra.mxu0 0.0
    %374 = vmatpush.msra.mxu0 0.0
    %375 = vmatpush.msra.mxu0 %v249
    %376 = vmatpush.msra.mxu0 %v185
    %377 = vmatpush.msra.mxu0 %v174
    %378 = vmatpush.msra.mxu0 %v163
    %379 = vmatpush.msra.mxu0 %v152
    %380 = vmatpush.msra.mxu0 %v141
    %381 = vmatpush.msra.mxu0 %v130
    %382 = vmatmul.f32.gmra.mxu0 %v230
    %v383 = vpop.f32.mrf.mxu0
    %v384 = vadd.f32 %v211, %v383
    %385 = vdwg.mxu0
    %386 = vmatpush.msra.mxu0 0.0
    %387 = vmatpush.msra.mxu0 0.0
    %388 = vmatpush.msra.mxu0 0.0
    %389 = vmatpush.msra.mxu0 0.0
    %390 = vmatpush.msra.mxu0 0.0
    %391 = vmatpush.msra.mxu0 0.0
    %392 = vmatpush.msra.mxu0 0.0
    %393 = vmatpush.msra.mxu0 0.0
    %394 = vmatpush.msra.mxu0 0.0
    %395 = vmatpush.msra.mxu0 %v252
    %396 = vmatpush.msra.mxu0 %v186
    %397 = vmatpush.msra.mxu0 %v175
    %398 = vmatpush.msra.mxu0 %v164
    %399 = vmatpush.msra.mxu0 %v153
    %400 = vmatpush.msra.mxu0 %v142
    %401 = vmatpush.msra.mxu0 %v131
    %402 = vmatmul.f32.gmra.mxu0 %v230
    %v403 = vpop.f32.mrf.mxu0
    %v404 = vadd.f32 %v212, %v403
    %405 = vdwg.mxu0
    %406 = vmatpush.msra.mxu0 0.0
    %407 = vmatpush.msra.mxu0 0.0
    %408 = vmatpush.msra.mxu0 0.0
    %409 = vmatpush.msra.mxu0 0.0
    %410 = vmatpush.msra.mxu0 0.0
    %411 = vmatpush.msra.mxu0 0.0
    %412 = vmatpush.msra.mxu0 0.0
    %413 = vmatpush.msra.mxu0 0.0
    %414 = vmatpush.msra.mxu0 0.0
    %415 = vmatpush.msra.mxu0 %v255
    %416 = vmatpush.msra.mxu0 %v187
    %417 = vmatpush.msra.mxu0 %v176
    %418 = vmatpush.msra.mxu0 %v165
    %419 = vmatpush.msra.mxu0 %v154
    %420 = vmatpush.msra.mxu0 %v143
    %421 = vmatpush.msra.mxu0 %v132
    %422 = vmatmul.f32.gmra.mxu0 %v230
    %v423 = vpop.f32.mrf.mxu0
    %v424 = vadd.f32 %v213, %v423
    %425 = vdwg.mxu0
    %426 = vmatpush.msra.mxu0 0.0
    %427 = vmatpush.msra.mxu0 0.0
    %428 = vmatpush.msra.mxu0 0.0
    %429 = vmatpush.msra.mxu0 0.0
    %430 = vmatpush.msra.mxu0 0.0
    %431 = vmatpush.msra.mxu0 0.0
    %432 = vmatpush.msra.mxu0 0.0
    %433 = vmatpush.msra.mxu0 0.0
    %434 = vmatpush.msra.mxu0 0.0
    %435 = vmatpush.msra.mxu0 %v258
    %436 = vmatpush.msra.mxu0 %v188
    %437 = vmatpush.msra.mxu0 %v177
    %438 = vmatpush.msra.mxu0 %v166
    %439 = vmatpush.msra.mxu0 %v155
    %440 = vmatpush.msra.mxu0 %v144
    %441 = vmatpush.msra.mxu0 %v133
    %442 = vmatmul.f32.gmra.mxu0 %v230
    %v443 = vpop.f32.mrf.mxu0
    %v444 = vadd.f32 %v214, %v443
    %445 = vdwg.mxu0
    %446 = vmatpush.msra.mxu0 0.0
    %447 = vmatpush.msra.mxu0 0.0
    %448 = vmatpush.msra.mxu0 0.0
    %449 = vmatpush.msra.mxu0 0.0
    %450 = vmatpush.msra.mxu0 0.0
    %451 = vmatpush.msra.mxu0 0.0
    %452 = vmatpush.msra.mxu0 0.0
    %453 = vmatpush.msra.mxu0 0.0
    %454 = vmatpush.msra.mxu0 0.0
    %455 = vmatpush.msra.mxu0 %v261
    %456 = vmatpush.msra.mxu0 %v189
    %457 = vmatpush.msra.mxu0 %v178
    %458 = vmatpush.msra.mxu0 %v167
    %459 = vmatpush.msra.mxu0 %v156
    %460 = vmatpush.msra.mxu0 %v145
    %461 = vmatpush.msra.mxu0 %v134
    %462 = vmatmul.f32.gmra.mxu0 %v230
    %v463 = vpop.f32.mrf.mxu0
    %v464 = vadd.f32 %v215, %v463
    %465 = vdwg.mxu0
    %466 = vmatpush.msra.mxu0 0.0
    %467 = vmatpush.msra.mxu0 0.0
    %468 = vmatpush.msra.mxu0 0.0
    %469 = vmatpush.msra.mxu0 0.0
    %470 = vmatpush.msra.mxu0 0.0
    %471 = vmatpush.msra.mxu0 0.0
    %472 = vmatpush.msra.mxu0 0.0
    %473 = vmatpush.msra.mxu0 0.0
    %474 = vmatpush.msra.mxu0 0.0
    %475 = vmatpush.msra.mxu0 %v264
    %476 = vmatpush.msra.mxu0 %v190
    %477 = vmatpush.msra.mxu0 %v179
    %478 = vmatpush.msra.mxu0 %v168
    %479 = vmatpush.msra.mxu0 %v157
    %480 = vmatpush.msra.mxu0 %v146
    %481 = vmatpush.msra.mxu0 %v135
    %482 = vmatmul.f32.gmra.mxu0 %v230
    %v483 = vpop.f32.mrf.mxu0
    %v484 = vadd.f32 %v216, %v483
    %485 = vdwg.mxu0
    %v486 = vmax.f32 %v284, 0.0
    %v487 = vmax.f32 %v304, 0.0
    %v488 = vmax.f32 %v324, 0.0
    %v489 = vmax.f32 %v344, 0.0
    %v490 = vmax.f32 %v364, 0.0
    %v491 = vmax.f32 %v384, 0.0
    %v492 = vmax.f32 %v404, 0.0
    %v493 = vmax.f32 %v424, 0.0
    %v494 = vmax.f32 %v444, 0.0
    %v495 = vmax.f32 %v464, 0.0
    %v496 = vmax.f32 %v484, 0.0
    %v497 = vpack.c.bf16 %v486, %v486
    %v498 = vpack.c.bf16 %v487, %v487
    %v499 = vpack.c.bf16 %v488, %v488
    %v500 = vpack.c.bf16 %v489, %v489
    %v501 = vpack.c.bf16 %v490, %v490
    %v502 = vpack.c.bf16 %v491, %v491
    %v503 = vpack.c.bf16 %v492, %v492
    %v504 = vpack.c.bf16 %v493, %v493
    %v505 = vpack.c.bf16 %v494, %v494
    %v506 = vpack.c.bf16 %v495, %v495
    %v507 = vpack.c.bf16 %v496, %v496
    %v508 = vld [vmem:[#allocation8] sm:$0xf]
    %v509 = vld [vmem:[#allocation8 + $0x4] sm:$0xf]
    %v510 = vld [vmem:[#allocation8 + $0x8] sm:$0xf]
    %v511 = vld [vmem:[#allocation8 + $0xc] sm:$0xf]
    %v512 = vld [vmem:[#allocation8 + $0x10] sm:$0xf]
    %v513 = vld [vmem:[#allocation8 + $0x14] sm:$0xf]
    %v514 = vld [vmem:[#allocation8 + $0x18] sm:$0xf]
    %v515 = vld [vmem:[#allocation8 + $0x1c] sm:$0xf]
    %v516 = vld [vmem:[#allocation8 + $0x20] sm:$0xf]
    %v517 = vld [vmem:[#allocation8 + $0x24] sm:$0xf]
    %v518 = vld [vmem:[#allocation8 + $0x28] sm:$0xf]
    %v519 = vld [vmem:[#allocation8 + $0x2c] sm:$0xf]
    %v520 = vld [vmem:[#allocation8 + $0x30] sm:$0xf]
    %v521 = vld [vmem:[#allocation8 + $0x34] sm:$0xf]
    %v522 = vld [vmem:[#allocation8 + $0x38] sm:$0xf]
    %v523 = vld [vmem:[#allocation8 + $0x3c] sm:$0xf]
    %v524 = vld [vmem:[#allocation8 + $0x40] sm:$0xf]
    %v525 = vld [vmem:[#allocation8 + $0x44] sm:$0xf]
    %v526 = vld [vmem:[#allocation8 + $0x48] sm:$0xf]
    %v527 = vld [vmem:[#allocation8 + $0x4c] sm:$0xf]
    %v528 = vld [vmem:[#allocation8 + $0x50] sm:$0xf]
    %v529 = vld [vmem:[#allocation8 + $0x54] sm:$0xf]
    %v530 = vld [vmem:[#allocation8 + $0x58] sm:$0xf]
    %v531 = vld [vmem:[#allocation8 + $0x5c] sm:$0xf]
    %v532 = vld [vmem:[#allocation8 + $0x60] sm:$0xf]
    %v533 = vld [vmem:[#allocation8 + $0x64] sm:$0xf]
    %v534 = vld [vmem:[#allocation8 + $0x68] sm:$0xf]
    %v535 = vld [vmem:[#allocation8 + $0x6c] sm:$0xf]
    %v536 = vld [vmem:[#allocation8 + $0x70] sm:$0xf]
    %v537 = vld [vmem:[#allocation8 + $0x74] sm:$0xf]
    %v538 = vld [vmem:[#allocation8 + $0x78] sm:$0xf]
    %v539 = vld [vmem:[#allocation8 + $0x7c] sm:$0xf]
    %v540 = vld [vmem:[#allocation8 + $0x80] sm:$0xf]
    %v541 = vld [vmem:[#allocation8 + $0x84] sm:$0xf]
    %v542 = vld [vmem:[#allocation8 + $0x88] sm:$0xf]
    %v543 = vld [vmem:[#allocation8 + $0x8c] sm:$0xf]
    %v544 = vld [vmem:[#allocation8 + $0x90] sm:$0xf]
    %v545 = vld [vmem:[#allocation8 + $0x94] sm:$0xf]
    %v546 = vld [vmem:[#allocation8 + $0x98] sm:$0xf]
    %v547 = vld [vmem:[#allocation8 + $0x9c] sm:$0xf]
    %v548 = vld [vmem:[#allocation8 + $0xa0] sm:$0xf]
    %v549 = vld [vmem:[#allocation8 + $0xa4] sm:$0xf]
    %v550 = vld [vmem:[#allocation8 + $0xa8] sm:$0xf]
    %v551 = vld [vmem:[#allocation8 + $0xac] sm:$0xf]
    %v552 = vld [vmem:[#allocation8 + $0xb0] sm:$0xf]
    %v553 = vld [vmem:[#allocation8 + $0xb4] sm:$0xf]
    %v554 = vld [vmem:[#allocation8 + $0xb8] sm:$0xf]
    %v555 = vld [vmem:[#allocation8 + $0xbc] sm:$0xf]
    %v556 = vld [vmem:[#allocation8 + $0xc0] sm:$0xf]
    %v557 = vld [vmem:[#allocation8 + $0xc4] sm:$0xf]
    %v558 = vld [vmem:[#allocation8 + $0xc8] sm:$0xf]
    %v559 = vld [vmem:[#allocation8 + $0xcc] sm:$0xf]
    %v560 = vld [vmem:[#allocation8 + $0xd0] sm:$0xf]
    %v561 = vld [vmem:[#allocation8 + $0xd4] sm:$0xf]
    %v562 = vld [vmem:[#allocation8 + $0xd8] sm:$0xf]
    %v563 = vld [vmem:[#allocation8 + $0xdc] sm:$0xf]
    %v564 = vld [vmem:[#allocation8 + $0xe0] sm:$0xf]
    %v565 = vld [vmem:[#allocation8 + $0xe4] sm:$0xf]
    %v566 = vld [vmem:[#allocation8 + $0xe8] sm:$0xf]
    %v567 = vld [vmem:[#allocation8 + $0xec] sm:$0xf]
    %v568 = vld [vmem:[#allocation8 + $0xf0] sm:$0xf]
    %v569 = vld [vmem:[#allocation8 + $0xf4] sm:$0xf]
    %v570 = vld [vmem:[#allocation8 + $0xf8] sm:$0xf]
    %v571 = vld [vmem:[#allocation8 + $0xfc] sm:$0xf]
    %v572 = vld [vmem:[#allocation8 + $0x100] sm:$0xf]
    %v573 = vld [vmem:[#allocation8 + $0x104] sm:$0xf]
    %v574 = vld [vmem:[#allocation8 + $0x108] sm:$0xf]
    %v575 = vld [vmem:[#allocation8 + $0x10c] sm:$0xf]
    %v576 = vld [vmem:[#allocation8 + $0x110] sm:$0xf]
    %v577 = vld [vmem:[#allocation8 + $0x114] sm:$0xf]
    %v578 = vld [vmem:[#allocation8 + $0x118] sm:$0xf]
    %v579 = vld [vmem:[#allocation8 + $0x11c] sm:$0xf]
    %v580 = vld [vmem:[#allocation8 + $0x120] sm:$0xf]
    %v581 = vld [vmem:[#allocation8 + $0x124] sm:$0xf]
    %v582 = vld [vmem:[#allocation8 + $0x128] sm:$0xf]
    %v583 = vld [vmem:[#allocation8 + $0x12c] sm:$0xf]
    %v584 = vld [vmem:[#allocation8 + $0x130] sm:$0xf]
    %v585 = vld [vmem:[#allocation8 + $0x134] sm:$0xf]
    %v586 = vld [vmem:[#allocation8 + $0x138] sm:$0xf]
    %v587 = vld [vmem:[#allocation8 + $0x13c] sm:$0xf]
    %v588 = vld [vmem:[#allocation8 + $0x140] sm:$0xf]
    %v589 = vld [vmem:[#allocation8 + $0x144] sm:$0xf]
    %v590 = vld [vmem:[#allocation8 + $0x148] sm:$0xf]
    %v591 = vld [vmem:[#allocation8 + $0x14c] sm:$0xf]
    %v592 = vld [vmem:[#allocation8 + $0x150] sm:$0xf]
    %v593 = vld [vmem:[#allocation8 + $0x154] sm:$0xf]
    %v594 = vld [vmem:[#allocation8 + $0x158] sm:$0xf]
    %v595 = vld [vmem:[#allocation8 + $0x15c] sm:$0xf]
    %v596 = vld [vmem:[#allocation8 + $0x160] sm:$0xf]
    %v597 = vld [vmem:[#allocation8 + $0x164] sm:$0xf]
    %v598 = vld [vmem:[#allocation8 + $0x168] sm:$0xf]
    %v599 = vld [vmem:[#allocation8 + $0x16c] sm:$0xf]
    %v600 = vld [vmem:[#allocation8 + $0x170] sm:$0xf]
    %v601 = vld [vmem:[#allocation8 + $0x174] sm:$0xf]
    %v602 = vld [vmem:[#allocation8 + $0x178] sm:$0xf]
    %v603 = vld [vmem:[#allocation8 + $0x17c] sm:$0xf]
    %v604 = vld [vmem:[#allocation8 + $0x180] sm:$0xf]
    %v605 = vld [vmem:[#allocation8 + $0x184] sm:$0xf]
    %v606 = vld [vmem:[#allocation8 + $0x188] sm:$0xf]
    %v607 = vld [vmem:[#allocation8 + $0x18c] sm:$0xf]
    %v608 = vld [vmem:[#allocation8 + $0x190] sm:$0xf]
    %v609 = vld [vmem:[#allocation8 + $0x194] sm:$0xf]
    %v610 = vld [vmem:[#allocation8 + $0x198] sm:$0xf]
    %v611 = vld [vmem:[#allocation8 + $0x19c] sm:$0xf]
    %v612 = vld [vmem:[#allocation8 + $0x1a0] sm:$0xf]
    %v613 = vld [vmem:[#allocation8 + $0x1a4] sm:$0xf]
    %v614 = vld [vmem:[#allocation8 + $0x1a8] sm:$0xf]
    %v615 = vld [vmem:[#allocation8 + $0x1ac] sm:$0xf]
    %v616 = vld [vmem:[#allocation8 + $0x1b0] sm:$0xf]
    %v617 = vld [vmem:[#allocation8 + $0x1b4] sm:$0xf]
    %v618 = vld [vmem:[#allocation8 + $0x1b8] sm:$0xf]
    %v619 = vld [vmem:[#allocation8 + $0x1bc] sm:$0xf]
    %v620 = vld [vmem:[#allocation8 + $0x1c0] sm:$0xf]
    %v621 = vld [vmem:[#allocation8 + $0x1c4] sm:$0xf]
    %v622 = vld [vmem:[#allocation8 + $0x1c8] sm:$0xf]
    %v623 = vld [vmem:[#allocation8 + $0x1cc] sm:$0xf]
    %v624 = vld [vmem:[#allocation8 + $0x1d0] sm:$0xf]
    %v625 = vld [vmem:[#allocation8 + $0x1d4] sm:$0xf]
    %v626 = vld [vmem:[#allocation8 + $0x1d8] sm:$0xf]
    %v627 = vld [vmem:[#allocation8 + $0x1dc] sm:$0xf]
    %v628 = vld [vmem:[#allocation8 + $0x1e0] sm:$0xf]
    %v629 = vld [vmem:[#allocation8 + $0x1e4] sm:$0xf]
    %v630 = vld [vmem:[#allocation8 + $0x1e8] sm:$0xf]
    %v631 = vld [vmem:[#allocation8 + $0x1ec] sm:$0xf]
    %v632 = vld [vmem:[#allocation8 + $0x1f0] sm:$0xf]
    %v633 = vld [vmem:[#allocation8 + $0x1f4] sm:$0xf]
    %v634 = vld [vmem:[#allocation8 + $0x1f8] sm:$0xf]
    %v635 = vld [vmem:[#allocation8 + $0x1fc] sm:$0xf]
    %v636 = vld [vmem:[#allocation8 + $0x200] sm:$0xf]
    %v637 = vld [vmem:[#allocation8 + $0x204] sm:$0xf]
    %v638 = vld [vmem:[#allocation8 + $0x208] sm:$0xf]
    %v639 = vld [vmem:[#allocation8 + $0x20c] sm:$0xf]
    %v640 = vld [vmem:[#allocation8 + $0x210] sm:$0xf]
    %v641 = vld [vmem:[#allocation8 + $0x214] sm:$0xf]
    %v642 = vld [vmem:[#allocation8 + $0x218] sm:$0xf]
    %v643 = vld [vmem:[#allocation8 + $0x21c] sm:$0xf]
    %v644 = vld [vmem:[#allocation8 + $0x220] sm:$0xf]
    %v645 = vld [vmem:[#allocation8 + $0x224] sm:$0xf]
    %v646 = vld [vmem:[#allocation8 + $0x228] sm:$0xf]
    %v647 = vld [vmem:[#allocation8 + $0x22c] sm:$0xf]
    %v648 = vld [vmem:[#allocation8 + $0x230] sm:$0xf]
    %v649 = vld [vmem:[#allocation8 + $0x234] sm:$0xf]
    %v650 = vld [vmem:[#allocation8 + $0x238] sm:$0xf]
    %v651 = vld [vmem:[#allocation8 + $0x23c] sm:$0xf]
    %v652 = vld [vmem:[#allocation8 + $0x240] sm:$0xf]
    %v653 = vld [vmem:[#allocation8 + $0x244] sm:$0xf]
    %v654 = vld [vmem:[#allocation8 + $0x248] sm:$0xf]
    %v655 = vld [vmem:[#allocation8 + $0x24c] sm:$0xf]
    %v656 = vld [vmem:[#allocation8 + $0x250] sm:$0xf]
    %v657 = vld [vmem:[#allocation8 + $0x254] sm:$0xf]
    %v658 = vld [vmem:[#allocation8 + $0x258] sm:$0xf]
    %v659 = vld [vmem:[#allocation8 + $0x25c] sm:$0xf]
    %v660 = vld [vmem:[#allocation8 + $0x260] sm:$0xf]
    %v661 = vld [vmem:[#allocation8 + $0x264] sm:$0xf]
    %v662 = vld [vmem:[#allocation8 + $0x268] sm:$0xf]
    %v663 = vld [vmem:[#allocation8 + $0x26c] sm:$0xf]
    %v664 = vld [vmem:[#allocation8 + $0x270] sm:$0xf]
    %v665 = vld [vmem:[#allocation8 + $0x274] sm:$0xf]
    %v666 = vld [vmem:[#allocation8 + $0x278] sm:$0xf]
    %v667 = vld [vmem:[#allocation8 + $0x27c] sm:$0xf]
    %v668 = vld [vmem:[#allocation8 + $0x280] sm:$0xf]
    %v669 = vld [vmem:[#allocation8 + $0x284] sm:$0xf]
    %v670 = vld [vmem:[#allocation8 + $0x288] sm:$0xf]
    %v671 = vld [vmem:[#allocation8 + $0x28c] sm:$0xf]
    %v672 = vld [vmem:[#allocation8 + $0x290] sm:$0xf]
    %v673 = vld [vmem:[#allocation8 + $0x294] sm:$0xf]
    %v674 = vld [vmem:[#allocation8 + $0x298] sm:$0xf]
    %v675 = vld [vmem:[#allocation8 + $0x29c] sm:$0xf]
    %v676 = vld [vmem:[#allocation8 + $0x2a0] sm:$0xf]
    %v677 = vld [vmem:[#allocation8 + $0x2a4] sm:$0xf]
    %v678 = vld [vmem:[#allocation8 + $0x2a8] sm:$0xf]
    %v679 = vld [vmem:[#allocation8 + $0x2ac] sm:$0xf]
    %v680 = vld [vmem:[#allocation8 + $0x2b0] sm:$0xf]
    %v681 = vld [vmem:[#allocation8 + $0x2b4] sm:$0xf]
    %v682 = vld [vmem:[#allocation8 + $0x2b8] sm:$0xf]
    %v683 = vld [vmem:[#allocation8 + $0x2bc] sm:$0xf]
    %v684 = vld [vmem:[#allocation10] sm:$0x1]
    %v685 = vperm.slane %v684, 0
    %v862 = vunpack.c.l.b16 %v508
    %v863 = vunpack.c.l.b16 %v509
    %v864 = vunpack.c.l.b16 %v510
    %v865 = vunpack.c.l.b16 %v511
    %v866 = vunpack.c.l.b16 %v512
    %v867 = vunpack.c.l.b16 %v513
    %v868 = vunpack.c.l.b16 %v514
    %v869 = vunpack.c.l.b16 %v515
    %v870 = vunpack.c.l.b16 %v516
    %v871 = vunpack.c.l.b16 %v517
    %v872 = vunpack.c.l.b16 %v518
    %v873 = vunpack.c.l.b16 %v519
    %v874 = vunpack.c.l.b16 %v520
    %v875 = vunpack.c.l.b16 %v521
    %v876 = vunpack.c.l.b16 %v522
    %v877 = vunpack.c.l.b16 %v523
    %v878 = vunpack.c.l.b16 %v524
    %v879 = vunpack.c.l.b16 %v525
    %v880 = vunpack.c.l.b16 %v526
    %v881 = vunpack.c.l.b16 %v527
    %v882 = vunpack.c.l.b16 %v528
    %v883 = vunpack.c.l.b16 %v529
    %v884 = vunpack.c.l.b16 %v530
    %v885 = vunpack.c.l.b16 %v531
    %v886 = vunpack.c.l.b16 %v532
    %v887 = vunpack.c.l.b16 %v533
    %v888 = vunpack.c.l.b16 %v534
    %v889 = vunpack.c.l.b16 %v535
    %v890 = vunpack.c.l.b16 %v536
    %v891 = vunpack.c.l.b16 %v537
    %v892 = vunpack.c.l.b16 %v538
    %v893 = vunpack.c.l.b16 %v539
    %v894 = vunpack.c.l.b16 %v540
    %v895 = vunpack.c.l.b16 %v541
    %v896 = vunpack.c.l.b16 %v542
    %v897 = vunpack.c.l.b16 %v543
    %v898 = vunpack.c.l.b16 %v544
    %v899 = vunpack.c.l.b16 %v545
    %v900 = vunpack.c.l.b16 %v546
    %v901 = vunpack.c.l.b16 %v547
    %v902 = vunpack.c.l.b16 %v548
    %v903 = vunpack.c.l.b16 %v549
    %v904 = vunpack.c.l.b16 %v550
    %v905 = vunpack.c.l.b16 %v551
    %v906 = vunpack.c.l.b16 %v552
    %v907 = vunpack.c.l.b16 %v553
    %v908 = vunpack.c.l.b16 %v554
    %v909 = vunpack.c.l.b16 %v555
    %v910 = vunpack.c.l.b16 %v556
    %v911 = vunpack.c.l.b16 %v557
    %v912 = vunpack.c.l.b16 %v558
    %v913 = vunpack.c.l.b16 %v559
    %v914 = vunpack.c.l.b16 %v560
    %v915 = vunpack.c.l.b16 %v561
    %v916 = vunpack.c.l.b16 %v562
    %v917 = vunpack.c.l.b16 %v563
    %v918 = vunpack.c.l.b16 %v564
    %v919 = vunpack.c.l.b16 %v565
    %v920 = vunpack.c.l.b16 %v566
    %v921 = vunpack.c.l.b16 %v567
    %v922 = vunpack.c.l.b16 %v568
    %v923 = vunpack.c.l.b16 %v569
    %v924 = vunpack.c.l.b16 %v570
    %v925 = vunpack.c.l.b16 %v571
    %v926 = vunpack.c.l.b16 %v572
    %v927 = vunpack.c.l.b16 %v573
    %v928 = vunpack.c.l.b16 %v574
    %v929 = vunpack.c.l.b16 %v575
    %v930 = vunpack.c.l.b16 %v576
    %v931 = vunpack.c.l.b16 %v577
    %v932 = vunpack.c.l.b16 %v578
    %v933 = vunpack.c.l.b16 %v579
    %v934 = vunpack.c.l.b16 %v580
    %v935 = vunpack.c.l.b16 %v581
    %v936 = vunpack.c.l.b16 %v582
    %v937 = vunpack.c.l.b16 %v583
    %v938 = vunpack.c.l.b16 %v584
    %v939 = vunpack.c.l.b16 %v585
    %v940 = vunpack.c.l.b16 %v586
    %v941 = vunpack.c.l.b16 %v587
    %v942 = vunpack.c.l.b16 %v588
    %v943 = vunpack.c.l.b16 %v589
    %v944 = vunpack.c.l.b16 %v590
    %v945 = vunpack.c.l.b16 %v591
    %v946 = vunpack.c.l.b16 %v592
    %v947 = vunpack.c.l.b16 %v593
    %v948 = vunpack.c.l.b16 %v594
    %v949 = vunpack.c.l.b16 %v595
    %v950 = vunpack.c.l.b16 %v596
    %v951 = vunpack.c.l.b16 %v597
    %v952 = vunpack.c.l.b16 %v598
    %v953 = vunpack.c.l.b16 %v599
    %v954 = vunpack.c.l.b16 %v600
    %v955 = vunpack.c.l.b16 %v601
    %v956 = vunpack.c.l.b16 %v602
    %v957 = vunpack.c.l.b16 %v603
    %v958 = vunpack.c.l.b16 %v604
    %v959 = vunpack.c.l.b16 %v605
    %v960 = vunpack.c.l.b16 %v606
    %v961 = vunpack.c.l.b16 %v607
    %v962 = vunpack.c.l.b16 %v608
    %v963 = vunpack.c.l.b16 %v609
    %v964 = vunpack.c.l.b16 %v610
    %v965 = vunpack.c.l.b16 %v611
    %v966 = vunpack.c.l.b16 %v612
    %v967 = vunpack.c.l.b16 %v613
    %v968 = vunpack.c.l.b16 %v614
    %v969 = vunpack.c.l.b16 %v615
    %v970 = vunpack.c.l.b16 %v616
    %v971 = vunpack.c.l.b16 %v617
    %v972 = vunpack.c.l.b16 %v618
    %v973 = vunpack.c.l.b16 %v619
    %v974 = vunpack.c.l.b16 %v620
    %v975 = vunpack.c.l.b16 %v621
    %v976 = vunpack.c.l.b16 %v622
    %v977 = vunpack.c.l.b16 %v623
    %v978 = vunpack.c.l.b16 %v624
    %v979 = vunpack.c.l.b16 %v625
    %v980 = vunpack.c.l.b16 %v626
    %v981 = vunpack.c.l.b16 %v627
    %v982 = vunpack.c.l.b16 %v628
    %v983 = vunpack.c.l.b16 %v629
    %v984 = vunpack.c.l.b16 %v630
    %v985 = vunpack.c.l.b16 %v631
    %v986 = vunpack.c.l.b16 %v632
    %v987 = vunpack.c.l.b16 %v633
    %v988 = vunpack.c.l.b16 %v634
    %v989 = vunpack.c.l.b16 %v635
    %v990 = vunpack.c.l.b16 %v636
    %v991 = vunpack.c.l.b16 %v637
    %v992 = vunpack.c.l.b16 %v638
    %v993 = vunpack.c.l.b16 %v639
    %v994 = vunpack.c.l.b16 %v640
    %v995 = vunpack.c.l.b16 %v641
    %v996 = vunpack.c.l.b16 %v642
    %v997 = vunpack.c.l.b16 %v643
    %v998 = vunpack.c.l.b16 %v644
    %v999 = vunpack.c.l.b16 %v645
    %v1000 = vunpack.c.l.b16 %v646
    %v1001 = vunpack.c.l.b16 %v647
    %v1002 = vunpack.c.l.b16 %v648
    %v1003 = vunpack.c.l.b16 %v649
    %v1004 = vunpack.c.l.b16 %v650
    %v1005 = vunpack.c.l.b16 %v651
    %v1006 = vunpack.c.l.b16 %v652
    %v1007 = vunpack.c.l.b16 %v653
    %v1008 = vunpack.c.l.b16 %v654
    %v1009 = vunpack.c.l.b16 %v655
    %v1010 = vunpack.c.l.b16 %v656
    %v1011 = vunpack.c.l.b16 %v657
    %v1012 = vunpack.c.l.b16 %v658
    %v1013 = vunpack.c.l.b16 %v659
    %v1014 = vunpack.c.l.b16 %v660
    %v1015 = vunpack.c.l.b16 %v661
    %v1016 = vunpack.c.l.b16 %v662
    %v1017 = vunpack.c.l.b16 %v663
    %v1018 = vunpack.c.l.b16 %v664
    %v1019 = vunpack.c.l.b16 %v665
    %v1020 = vunpack.c.l.b16 %v666
    %v1021 = vunpack.c.l.b16 %v667
    %v1022 = vunpack.c.l.b16 %v668
    %v1023 = vunpack.c.l.b16 %v669
    %v1024 = vunpack.c.l.b16 %v670
    %v1025 = vunpack.c.l.b16 %v671
    %v1026 = vunpack.c.l.b16 %v672
    %v1027 = vunpack.c.l.b16 %v673
    %v1028 = vunpack.c.l.b16 %v674
    %v1029 = vunpack.c.l.b16 %v675
    %v1030 = vunpack.c.l.b16 %v676
    %v1031 = vunpack.c.l.b16 %v677
    %v1032 = vunpack.c.l.b16 %v678
    %v1033 = vunpack.c.l.b16 %v679
    %v1034 = vunpack.c.l.b16 %v680
    %v1035 = vunpack.c.l.b16 %v681
    %v1036 = vunpack.c.l.b16 %v682
    %v1037 = vunpack.c.l.b16 %v683
    %v1038 = vpack.c.b16 %v863, %v862
    %v1039 = vpack.c.b16 %v865, %v864
    %v1040 = vpack.c.b16 %v867, %v866
    %v1041 = vpack.c.b16 %v869, %v868
    %v1042 = vpack.c.b16 %v871, %v870
    %v1043 = vpack.c.b16 %v873, %v872
    %v1044 = vpack.c.b16 %v875, %v874
    %v1045 = vpack.c.b16 %v877, %v876
    %v1046 = vpack.c.b16 %v879, %v878
    %v1047 = vpack.c.b16 %v881, %v880
    %v1048 = vpack.c.b16 %v883, %v882
    %v1049 = vpack.c.b16 %v885, %v884
    %v1050 = vpack.c.b16 %v887, %v886
    %v1051 = vpack.c.b16 %v889, %v888
    %v1052 = vpack.c.b16 %v891, %v890
    %v1053 = vpack.c.b16 %v893, %v892
    %v1054 = vpack.c.b16 %v895, %v894
    %v1055 = vpack.c.b16 %v897, %v896
    %v1056 = vpack.c.b16 %v899, %v898
    %v1057 = vpack.c.b16 %v901, %v900
    %v1058 = vpack.c.b16 %v903, %v902
    %v1059 = vpack.c.b16 %v905, %v904
    %v1060 = vpack.c.b16 %v907, %v906
    %v1061 = vpack.c.b16 %v909, %v908
    %v1062 = vpack.c.b16 %v911, %v910
    %v1063 = vpack.c.b16 %v913, %v912
    %v1064 = vpack.c.b16 %v915, %v914
    %v1065 = vpack.c.b16 %v917, %v916
    %v1066 = vpack.c.b16 %v919, %v918
    %v1067 = vpack.c.b16 %v921, %v920
    %v1068 = vpack.c.b16 %v923, %v922
    %v1069 = vpack.c.b16 %v925, %v924
    %v1070 = vpack.c.b16 %v927, %v926
    %v1071 = vpack.c.b16 %v929, %v928
    %v1072 = vpack.c.b16 %v931, %v930
    %v1073 = vpack.c.b16 %v933, %v932
    %v1074 = vpack.c.b16 %v935, %v934
    %v1075 = vpack.c.b16 %v937, %v936
    %v1076 = vpack.c.b16 %v939, %v938
    %v1077 = vpack.c.b16 %v941, %v940
    %v1078 = vpack.c.b16 %v943, %v942
    %v1079 = vpack.c.b16 %v945, %v944
    %v1080 = vpack.c.b16 %v947, %v946
    %v1081 = vpack.c.b16 %v949, %v948
    %v1082 = vpack.c.b16 %v951, %v950
    %v1083 = vpack.c.b16 %v953, %v952
    %v1084 = vpack.c.b16 %v955, %v954
    %v1085 = vpack.c.b16 %v957, %v956
    %v1086 = vpack.c.b16 %v959, %v958
    %v1087 = vpack.c.b16 %v961, %v960
    %v1088 = vpack.c.b16 %v963, %v962
    %v1089 = vpack.c.b16 %v965, %v964
    %v1090 = vpack.c.b16 %v967, %v966
    %v1091 = vpack.c.b16 %v969, %v968
    %v1092 = vpack.c.b16 %v971, %v970
    %v1093 = vpack.c.b16 %v973, %v972
    %v1094 = vpack.c.b16 %v975, %v974
    %v1095 = vpack.c.b16 %v977, %v976
    %v1096 = vpack.c.b16 %v979, %v978
    %v1097 = vpack.c.b16 %v981, %v980
    %v1098 = vpack.c.b16 %v983, %v982
    %v1099 = vpack.c.b16 %v985, %v984
    %v1100 = vpack.c.b16 %v987, %v986
    %v1101 = vpack.c.b16 %v989, %v988
    %v1102 = vpack.c.b16 %v991, %v990
    %v1103 = vpack.c.b16 %v993, %v992
    %v1104 = vpack.c.b16 %v995, %v994
    %v1105 = vpack.c.b16 %v997, %v996
    %v1106 = vpack.c.b16 %v999, %v998
    %v1107 = vpack.c.b16 %v1001, %v1000
    %v1108 = vpack.c.b16 %v1003, %v1002
    %v1109 = vpack.c.b16 %v1005, %v1004
    %v1110 = vpack.c.b16 %v1007, %v1006
    %v1111 = vpack.c.b16 %v1009, %v1008
    %v1112 = vpack.c.b16 %v1011, %v1010
    %v1113 = vpack.c.b16 %v1013, %v1012
    %v1114 = vpack.c.b16 %v1015, %v1014
    %v1115 = vpack.c.b16 %v1017, %v1016
    %v1116 = vpack.c.b16 %v1019, %v1018
    %v1117 = vpack.c.b16 %v1021, %v1020
    %v1118 = vpack.c.b16 %v1023, %v1022
    %v1119 = vpack.c.b16 %v1025, %v1024
    %v1120 = vpack.c.b16 %v1027, %v1026
    %v1121 = vpack.c.b16 %v1029, %v1028
    %v1122 = vpack.c.b16 %v1031, %v1030
    %v1123 = vpack.c.b16 %v1033, %v1032
    %v1124 = vpack.c.b16 %v1035, %v1034
    %v1125 = vpack.c.b16 %v1037, %v1036
    %1214 = vmatpush.bf16.msra.mxu0 %v1045
    %1215 = vmatpush.bf16.msra.mxu0 %v1044
    %1216 = vmatpush.bf16.msra.mxu0 %v1043
    %1217 = vmatpush.bf16.msra.mxu0 %v1042
    %1218 = vmatpush.bf16.msra.mxu0 %v1041
    %1219 = vmatpush.bf16.msra.mxu0 %v1040
    %1220 = vmatpush.bf16.msra.mxu0 %v1039
    %1221 = vmatpush.bf16.msra.mxu0 %v1038
    %1222 = vmatmul.bf16.gmra.mxu0 %v497
    %v1223 = vpop.f32.mrf.mxu0
    %v1224 = vadd.f32 %v685, %v1223
    %v1225 = vpop.f32.mrf.mxu0
    %1226 = vdwg.mxu0
    %1227 = vmatpush.bf16.msra.mxu0 %v1053
    %1228 = vmatpush.bf16.msra.mxu0 %v1052
    %1229 = vmatpush.bf16.msra.mxu0 %v1051
    %1230 = vmatpush.bf16.msra.mxu0 %v1050
    %1231 = vmatpush.bf16.msra.mxu0 %v1049
    %1232 = vmatpush.bf16.msra.mxu0 %v1048
    %1233 = vmatpush.bf16.msra.mxu0 %v1047
    %1234 = vmatpush.bf16.msra.mxu0 %v1046
    %1235 = vmatmul.bf16.gmra.mxu0 %v498
    %v1236 = vpop.f32.mrf.mxu0
    %v1237 = vadd.f32 %v1224, %v1236
    %v1238 = vpop.f32.mrf.mxu0
    %1239 = vdwg.mxu0
    %1240 = vmatpush.bf16.msra.mxu0 %v1061
    %1241 = vmatpush.bf16.msra.mxu0 %v1060
    %1242 = vmatpush.bf16.msra.mxu0 %v1059
    %1243 = vmatpush.bf16.msra.mxu0 %v1058
    %1244 = vmatpush.bf16.msra.mxu0 %v1057
    %1245 = vmatpush.bf16.msra.mxu0 %v1056
    %1246 = vmatpush.bf16.msra.mxu0 %v1055
    %1247 = vmatpush.bf16.msra.mxu0 %v1054
    %1248 = vmatmul.bf16.gmra.mxu0 %v499
    %v1249 = vpop.f32.mrf.mxu0
    %v1250 = vadd.f32 %v1237, %v1249
    %v1251 = vpop.f32.mrf.mxu0
    %1252 = vdwg.mxu0
    %1253 = vmatpush.bf16.msra.mxu0 %v1069
    %1254 = vmatpush.bf16.msra.mxu0 %v1068
    %1255 = vmatpush.bf16.msra.mxu0 %v1067
    %1256 = vmatpush.bf16.msra.mxu0 %v1066
    %1257 = vmatpush.bf16.msra.mxu0 %v1065
    %1258 = vmatpush.bf16.msra.mxu0 %v1064
    %1259 = vmatpush.bf16.msra.mxu0 %v1063
    %1260 = vmatpush.bf16.msra.mxu0 %v1062
    %1261 = vmatmul.bf16.gmra.mxu0 %v500
    %v1262 = vpop.f32.mrf.mxu0
    %v1263 = vadd.f32 %v1250, %v1262
    %v1264 = vpop.f32.mrf.mxu0
    %1265 = vdwg.mxu0
    %1266 = vmatpush.bf16.msra.mxu0 %v1077
    %1267 = vmatpush.bf16.msra.mxu0 %v1076
    %1268 = vmatpush.bf16.msra.mxu0 %v1075
    %1269 = vmatpush.bf16.msra.mxu0 %v1074
    %1270 = vmatpush.bf16.msra.mxu0 %v1073
    %1271 = vmatpush.bf16.msra.mxu0 %v1072
    %1272 = vmatpush.bf16.msra.mxu0 %v1071
    %1273 = vmatpush.bf16.msra.mxu0 %v1070
    %1274 = vmatmul.bf16.gmra.mxu0 %v501
    %v1275 = vpop.f32.mrf.mxu0
    %v1276 = vadd.f32 %v1263, %v1275
    %v1277 = vpop.f32.mrf.mxu0
    %1278 = vdwg.mxu0
    %1279 = vmatpush.bf16.msra.mxu0 %v1085
    %1280 = vmatpush.bf16.msra.mxu0 %v1084
    %1281 = vmatpush.bf16.msra.mxu0 %v1083
    %1282 = vmatpush.bf16.msra.mxu0 %v1082
    %1283 = vmatpush.bf16.msra.mxu0 %v1081
    %1284 = vmatpush.bf16.msra.mxu0 %v1080
    %1285 = vmatpush.bf16.msra.mxu0 %v1079
    %1286 = vmatpush.bf16.msra.mxu0 %v1078
    %1287 = vmatmul.bf16.gmra.mxu0 %v502
    %v1288 = vpop.f32.mrf.mxu0
    %v1289 = vadd.f32 %v1276, %v1288
    %v1290 = vpop.f32.mrf.mxu0
    %1291 = vdwg.mxu0
    %1292 = vmatpush.bf16.msra.mxu0 %v1093
    %1293 = vmatpush.bf16.msra.mxu0 %v1092
    %1294 = vmatpush.bf16.msra.mxu0 %v1091
    %1295 = vmatpush.bf16.msra.mxu0 %v1090
    %1296 = vmatpush.bf16.msra.mxu0 %v1089
    %1297 = vmatpush.bf16.msra.mxu0 %v1088
    %1298 = vmatpush.bf16.msra.mxu0 %v1087
    %1299 = vmatpush.bf16.msra.mxu0 %v1086
    %1300 = vmatmul.bf16.gmra.mxu0 %v503
    %v1301 = vpop.f32.mrf.mxu0
    %v1302 = vadd.f32 %v1289, %v1301
    %v1303 = vpop.f32.mrf.mxu0
    %1304 = vdwg.mxu0
    %1305 = vmatpush.bf16.msra.mxu0 %v1101
    %1306 = vmatpush.bf16.msra.mxu0 %v1100
    %1307 = vmatpush.bf16.msra.mxu0 %v1099
    %1308 = vmatpush.bf16.msra.mxu0 %v1098
    %1309 = vmatpush.bf16.msra.mxu0 %v1097
    %1310 = vmatpush.bf16.msra.mxu0 %v1096
    %1311 = vmatpush.bf16.msra.mxu0 %v1095
    %1312 = vmatpush.bf16.msra.mxu0 %v1094
    %1313 = vmatmul.bf16.gmra.mxu0 %v504
    %v1314 = vpop.f32.mrf.mxu0
    %v1315 = vadd.f32 %v1302, %v1314
    %v1316 = vpop.f32.mrf.mxu0
    %1317 = vdwg.mxu0
    %1318 = vmatpush.bf16.msra.mxu0 %v1109
    %1319 = vmatpush.bf16.msra.mxu0 %v1108
    %1320 = vmatpush.bf16.msra.mxu0 %v1107
    %1321 = vmatpush.bf16.msra.mxu0 %v1106
    %1322 = vmatpush.bf16.msra.mxu0 %v1105
    %1323 = vmatpush.bf16.msra.mxu0 %v1104
    %1324 = vmatpush.bf16.msra.mxu0 %v1103
    %1325 = vmatpush.bf16.msra.mxu0 %v1102
    %1326 = vmatmul.bf16.gmra.mxu0 %v505
    %v1327 = vpop.f32.mrf.mxu0
    %v1328 = vadd.f32 %v1315, %v1327
    %v1329 = vpop.f32.mrf.mxu0
    %1330 = vdwg.mxu0
    %1331 = vmatpush.bf16.msra.mxu0 %v1117
    %1332 = vmatpush.bf16.msra.mxu0 %v1116
    %1333 = vmatpush.bf16.msra.mxu0 %v1115
    %1334 = vmatpush.bf16.msra.mxu0 %v1114
    %1335 = vmatpush.bf16.msra.mxu0 %v1113
    %1336 = vmatpush.bf16.msra.mxu0 %v1112
    %1337 = vmatpush.bf16.msra.mxu0 %v1111
    %1338 = vmatpush.bf16.msra.mxu0 %v1110
    %1339 = vmatmul.bf16.gmra.mxu0 %v506
    %v1340 = vpop.f32.mrf.mxu0
    %v1341 = vadd.f32 %v1328, %v1340
    %v1342 = vpop.f32.mrf.mxu0
    %1343 = vdwg.mxu0
    %1344 = vmatpush.bf16.msra.mxu0 %v1125
    %1345 = vmatpush.bf16.msra.mxu0 %v1124
    %1346 = vmatpush.bf16.msra.mxu0 %v1123
    %1347 = vmatpush.bf16.msra.mxu0 %v1122
    %1348 = vmatpush.bf16.msra.mxu0 %v1121
    %1349 = vmatpush.bf16.msra.mxu0 %v1120
    %1350 = vmatpush.bf16.msra.mxu0 %v1119
    %1351 = vmatpush.bf16.msra.mxu0 %v1118
    %1352 = vmatmul.bf16.gmra.mxu0 %v507
    %v1353 = vpop.f32.mrf.mxu0
    %v1354 = vadd.f32 %v1341, %v1353
    %v1355 = vpop.f32.mrf.mxu0
    %1356 = vdwg.mxu0
    %v1357 = vmax.f32 %v1354, 0.0
    %v1358 = vpack.c.bf16 %v1357, %v1357
    %v1359 = vld [vmem:[#allocation11] sm:$0xf]
    %v1360 = vld [vmem:[#allocation11 + $0x4] sm:$0xf]
    %v1361 = vld [vmem:[#allocation11 + $0x8] sm:$0xf]
    %v1362 = vld [vmem:[#allocation11 + $0xc] sm:$0xf]
    %v1363 = vld [vmem:[#allocation11 + $0x10] sm:$0xf]
    %v1364 = vld [vmem:[#allocation11 + $0x14] sm:$0xf]
    %v1365 = vld [vmem:[#allocation11 + $0x18] sm:$0xf]
    %v1366 = vld [vmem:[#allocation11 + $0x1c] sm:$0xf]
    %v1367 = vld [vmem:[#allocation11 + $0x20] sm:$0xf]
    %v1368 = vld [vmem:[#allocation11 + $0x24] sm:$0xf]
    %v1369 = vld [vmem:[#allocation11 + $0x28] sm:$0xf]
    %v1370 = vld [vmem:[#allocation11 + $0x2c] sm:$0xf]
    %v1371 = vld [vmem:[#allocation11 + $0x30] sm:$0xf]
    %v1372 = vld [vmem:[#allocation11 + $0x34] sm:$0xf]
    %v1373 = vld [vmem:[#allocation11 + $0x38] sm:$0xf]
    %v1374 = vld [vmem:[#allocation11 + $0x3c] sm:$0xf]
    %v1375 = vld [vmem:[#allocation10 + $0x1] sm:$0x1]
    %v1376 = vperm.slane %v1375, 0
    %v1393 = vunpack.c.l.b16 %v1359
    %v1394 = vunpack.c.l.b16 %v1360
    %v1395 = vunpack.c.l.b16 %v1361
    %v1396 = vunpack.c.l.b16 %v1362
    %v1397 = vunpack.c.l.b16 %v1363
    %v1398 = vunpack.c.l.b16 %v1364
    %v1399 = vunpack.c.l.b16 %v1365
    %v1400 = vunpack.c.l.b16 %v1366
    %v1401 = vunpack.c.l.b16 %v1367
    %v1402 = vunpack.c.l.b16 %v1368
    %v1403 = vunpack.c.l.b16 %v1369
    %v1404 = vunpack.c.l.b16 %v1370
    %v1405 = vunpack.c.l.b16 %v1371
    %v1406 = vunpack.c.l.b16 %v1372
    %v1407 = vunpack.c.l.b16 %v1373
    %v1408 = vunpack.c.l.b16 %v1374
    %v1409 = vpack.c.b16 %v1394, %v1393
    %v1410 = vpack.c.b16 %v1396, %v1395
    %v1411 = vpack.c.b16 %v1398, %v1397
    %v1412 = vpack.c.b16 %v1400, %v1399
    %v1413 = vpack.c.b16 %v1402, %v1401
    %v1414 = vpack.c.b16 %v1404, %v1403
    %v1415 = vpack.c.b16 %v1406, %v1405
    %v1416 = vpack.c.b16 %v1408, %v1407
    %1425 = vmatpush.bf16.msra.mxu0 %v1416
    %1426 = vmatpush.bf16.msra.mxu0 %v1415
    %1427 = vmatpush.bf16.msra.mxu0 %v1414
    %1428 = vmatpush.bf16.msra.mxu0 %v1413
    %1429 = vmatpush.bf16.msra.mxu0 %v1412
    %1430 = vmatpush.bf16.msra.mxu0 %v1411
    %1431 = vmatpush.bf16.msra.mxu0 %v1410
    %1432 = vmatpush.bf16.msra.mxu0 %v1409
    %1433 = vmatmul.bf16.gmra.mxu0 %v1358
    %v1434 = vpop.f32.mrf.mxu0
    %v1435 = vadd.f32 %v1376, %v1434
    %v1436 = vpop.f32.mrf.mxu0
    %1437 = vdwg.mxu0
    %v1438 = vmax.f32 %v1435, 0.0
    %v1439 = vpack.c.bf16 %v1438, %v1438
    %v1440 = vld [vmem:[%s6] sm:$0xff]
    %v1441 = vld [vmem:[%s6 + $0x8] sm:$0xf]
    %v1442 = vld [vmem:[%s6 + $0xc] sm:$0xff]
    %v1443 = vld [vmem:[%s6 + $0x14] sm:$0xf]
    %v1444 = vld [vmem:[%s6 + $0x18] sm:$0xff]
    %v1445 = vld [vmem:[%s6 + $0x20] sm:$0xf]
    %v1446 = vld [vmem:[%s6 + $0x24] sm:$0xff]
    %v1447 = vld [vmem:[%s6 + $0x2c] sm:$0xf]
    %v1448 = vld [vmem:[%s6 + $0x30] sm:$0xff]
    %v1449 = vld [vmem:[%s6 + $0x38] sm:$0xf]
    %v1450 = vld [vmem:[%s6 + $0x3c] sm:$0xff]
    %v1451 = vld [vmem:[%s6 + $0x44] sm:$0xf]
    %v1452 = vld [vmem:[%s6 + $0x48] sm:$0xff]
    %v1453 = vld [vmem:[%s6 + $0x50] sm:$0xf]
    %v1454 = vld [vmem:[%s6 + $0x54] sm:$0xff]
    %v1455 = vld [vmem:[%s6 + $0x5c] sm:$0xf]
    %v1456 = vld [vmem:[%s6 + $0x60] sm:$0xff]
    %v1457 = vld [vmem:[%s6 + $0x68] sm:$0xf]
    %v1458 = vld [vmem:[%s6 + $0x6c] sm:$0xff]
    %v1459 = vld [vmem:[%s6 + $0x74] sm:$0xf]
    %v1460 = vld [vmem:[%s6 + $0x78] sm:$0xff]
    %v1461 = vld [vmem:[%s6 + $0x80] sm:$0xf]
    %v1462 = vld [vmem:[%s6 + $0x84] sm:$0xff]
    %v1463 = vld [vmem:[%s6 + $0x8c] sm:$0xf]
    %v1464 = vld [vmem:[%s6 + $0x90] sm:$0xff]
    %v1465 = vld [vmem:[%s6 + $0x98] sm:$0xf]
    %v1466 = vld [vmem:[%s6 + $0x9c] sm:$0xff]
    %v1467 = vld [vmem:[%s6 + $0xa4] sm:$0xf]
    %v1468 = vld [vmem:[%s6 + $0xa8] sm:$0xff]
    %v1469 = vld [vmem:[%s6 + $0xb0] sm:$0xf]
    %v1470 = vld [vmem:[%s6 + $0xb4] sm:$0xff]
    %v1471 = vld [vmem:[%s6 + $0xbc] sm:$0xf]
    %v1472 = vld [vmem:[%s7] sm:$0x7]
    %v1474 = vperm.slane %v1472, 0
    %v1475 = vperm.slane %v1472, 1
    %v1476 = vperm.slane %v1472, 2
    %v1512 = vunpack.c.l.b16 %v1440
    %v1513 = vunpack.c.h.b16 %v1440
    %v1514 = vunpack.c.l.b16 %v1441
    %v1515 = vunpack.c.l.b16 %v1442
    %v1516 = vunpack.c.h.b16 %v1442
    %v1517 = vunpack.c.l.b16 %v1443
    %v1518 = vunpack.c.l.b16 %v1444
    %v1519 = vunpack.c.h.b16 %v1444
    %v1520 = vunpack.c.l.b16 %v1445
    %v1521 = vunpack.c.l.b16 %v1446
    %v1522 = vunpack.c.h.b16 %v1446
    %v1523 = vunpack.c.l.b16 %v1447
    %v1524 = vunpack.c.l.b16 %v1448
    %v1525 = vunpack.c.h.b16 %v1448
    %v1526 = vunpack.c.l.b16 %v1449
    %v1527 = vunpack.c.l.b16 %v1450
    %v1528 = vunpack.c.h.b16 %v1450
    %v1529 = vunpack.c.l.b16 %v1451
    %v1530 = vunpack.c.l.b16 %v1452
    %v1531 = vunpack.c.h.b16 %v1452
    %v1532 = vunpack.c.l.b16 %v1453
    %v1533 = vunpack.c.l.b16 %v1454
    %v1534 = vunpack.c.h.b16 %v1454
    %v1535 = vunpack.c.l.b16 %v1455
    %v1536 = vunpack.c.l.b16 %v1456
    %v1537 = vunpack.c.h.b16 %v1456
    %v1538 = vunpack.c.l.b16 %v1457
    %v1539 = vunpack.c.l.b16 %v1458
    %v1540 = vunpack.c.h.b16 %v1458
    %v1541 = vunpack.c.l.b16 %v1459
    %v1542 = vunpack.c.l.b16 %v1460
    %v1543 = vunpack.c.h.b16 %v1460
    %v1544 = vunpack.c.l.b16 %v1461
    %v1545 = vunpack.c.l.b16 %v1462
    %v1546 = vunpack.c.h.b16 %v1462
    %v1547 = vunpack.c.l.b16 %v1463
    %v1548 = vunpack.c.l.b16 %v1464
    %v1549 = vunpack.c.h.b16 %v1464
    %v1550 = vunpack.c.l.b16 %v1465
    %v1551 = vunpack.c.l.b16 %v1466
    %v1552 = vunpack.c.h.b16 %v1466
    %v1553 = vunpack.c.l.b16 %v1467
    %v1554 = vunpack.c.l.b16 %v1468
    %v1555 = vunpack.c.h.b16 %v1468
    %v1556 = vunpack.c.l.b16 %v1469
    %v1557 = vunpack.c.l.b16 %v1470
    %v1558 = vunpack.c.h.b16 %v1470
    %v1559 = vunpack.c.l.b16 %v1471
    %v1560 = vpack.c.b16 %v1515, %v1512
    %v1561 = vpack.c.b16 %v1516, %v1513
    %v1562 = vpack.c.b16 %v1517, %v1514
    %v1563 = vpack.c.b16 %v1521, %v1518
    %v1564 = vpack.c.b16 %v1522, %v1519
    %v1565 = vpack.c.b16 %v1523, %v1520
    %v1566 = vpack.c.b16 %v1527, %v1524
    %v1567 = vpack.c.b16 %v1528, %v1525
    %v1568 = vpack.c.b16 %v1529, %v1526
    %v1569 = vpack.c.b16 %v1533, %v1530
    %v1570 = vpack.c.b16 %v1534, %v1531
    %v1571 = vpack.c.b16 %v1535, %v1532
    %v1572 = vpack.c.b16 %v1539, %v1536
    %v1573 = vpack.c.b16 %v1540, %v1537
    %v1574 = vpack.c.b16 %v1541, %v1538
    %v1575 = vpack.c.b16 %v1545, %v1542
    %v1576 = vpack.c.b16 %v1546, %v1543
    %v1577 = vpack.c.b16 %v1547, %v1544
    %v1578 = vpack.c.b16 %v1551, %v1548
    %v1579 = vpack.c.b16 %v1552, %v1549
    %v1580 = vpack.c.b16 %v1553, %v1550
    %v1581 = vpack.c.b16 %v1557, %v1554
    %v1582 = vpack.c.b16 %v1558, %v1555
    %v1583 = vpack.c.b16 %v1559, %v1556
    %1608 = vmatpush.bf16.msra.mxu0 %v1581
    %1609 = vmatpush.bf16.msra.mxu0 %v1578
    %1610 = vmatpush.bf16.msra.mxu0 %v1575
    %1611 = vmatpush.bf16.msra.mxu0 %v1572
    %1612 = vmatpush.bf16.msra.mxu0 %v1569
    %1613 = vmatpush.bf16.msra.mxu0 %v1566
    %1614 = vmatpush.bf16.msra.mxu0 %v1563
    %1615 = vmatpush.bf16.msra.mxu0 %v1560
    %1616 = vmatmul.bf16.gmra.mxu0 %v1439
    %v1617 = vpop.f32.mrf.mxu0
    %v1618 = vadd.f32 %v1474, %v1617
    %v1619 = vpop.f32.mrf.mxu0
    %1620 = vdwg.mxu0
    %1621 = vmatpush.bf16.msra.mxu0 %v1582
    %1622 = vmatpush.bf16.msra.mxu0 %v1579
    %1623 = vmatpush.bf16.msra.mxu0 %v1576
    %1624 = vmatpush.bf16.msra.mxu0 %v1573
    %1625 = vmatpush.bf16.msra.mxu0 %v1570
    %1626 = vmatpush.bf16.msra.mxu0 %v1567
    %1627 = vmatpush.bf16.msra.mxu0 %v1564
    %1628 = vmatpush.bf16.msra.mxu0 %v1561
    %1629 = vmatmul.bf16.gmra.mxu0 %v1439
    %v1630 = vpop.f32.mrf.mxu0
    %v1631 = vadd.f32 %v1475, %v1630
    %v1632 = vpop.f32.mrf.mxu0
    %1633 = vdwg.mxu0
    %1634 = vmatpush.bf16.msra.mxu0 %v1583
    %1635 = vmatpush.bf16.msra.mxu0 %v1580
    %1636 = vmatpush.bf16.msra.mxu0 %v1577
    %1637 = vmatpush.bf16.msra.mxu0 %v1574
    %1638 = vmatpush.bf16.msra.mxu0 %v1571
    %1639 = vmatpush.bf16.msra.mxu0 %v1568
    %1640 = vmatpush.bf16.msra.mxu0 %v1565
    %1641 = vmatpush.bf16.msra.mxu0 %v1562
    %1642 = vmatmul.bf16.gmra.mxu0 %v1439
    %v1643 = vpop.f32.mrf.mxu0
    %v1644 = vadd.f32 %v1476, %v1643
    %v1645 = vpop.f32.mrf.mxu0
    %1646 = vdwg.mxu0
    %v1647 = vmax.f32 %v1618, 0.0
    %v1648 = vmax.f32 %v1631, 0.0
    %v1649 = vmax.f32 %v1644, 0.0
    %v1650 = vpack.c.bf16 %v1647, %v1647
    %v1651 = vld [vmem:[%s8] sm:$0xf]
    %v1652 = vld [vmem:[%s8 + $0x4] sm:$0xf]
    %v1653 = vld [vmem:[%s8 + $0x8] sm:$0xf]
    %v1654 = vld [vmem:[%s8 + $0xc] sm:$0xf]
    %v1655 = vld [vmem:[%s8 + $0x10] sm:$0xf]
    %v1656 = vld [vmem:[%s8 + $0x14] sm:$0xf]
    %v1657 = vld [vmem:[%s8 + $0x18] sm:$0xf]
    %v1658 = vld [vmem:[%s8 + $0x1c] sm:$0xf]
    %v1659 = vld [vmem:[%s8 + $0x20] sm:$0xf]
    %v1660 = vld [vmem:[%s8 + $0x24] sm:$0xf]
    %v1661 = vld [vmem:[%s8 + $0x28] sm:$0xf]
    %v1662 = vld [vmem:[%s8 + $0x2c] sm:$0xf]
    %v1663 = vld [vmem:[%s8 + $0x30] sm:$0xf]
    %v1664 = vld [vmem:[%s8 + $0x34] sm:$0xf]
    %v1665 = vld [vmem:[%s8 + $0x38] sm:$0xf]
    %v1666 = vld [vmem:[%s8 + $0x3c] sm:$0xf]
    %v1667 = vld [vmem:[%s9] sm:$0x1]
    %v1669 = vperm.slane %v1667, 0
    %v1687 = vunpack.c.l.b16 %v1651
    %v1688 = vunpack.c.l.b16 %v1652
    %v1689 = vunpack.c.l.b16 %v1653
    %v1690 = vunpack.c.l.b16 %v1654
    %v1691 = vunpack.c.l.b16 %v1655
    %v1692 = vunpack.c.l.b16 %v1656
    %v1693 = vunpack.c.l.b16 %v1657
    %v1694 = vunpack.c.l.b16 %v1658
    %v1695 = vunpack.c.l.b16 %v1659
    %v1696 = vunpack.c.l.b16 %v1660
    %v1697 = vunpack.c.l.b16 %v1661
    %v1698 = vunpack.c.l.b16 %v1662
    %v1699 = vunpack.c.l.b16 %v1663
    %v1700 = vunpack.c.l.b16 %v1664
    %v1701 = vunpack.c.l.b16 %v1665
    %v1702 = vunpack.c.l.b16 %v1666
    %v1703 = vpack.c.b16 %v1688, %v1687
    %v1704 = vpack.c.b16 %v1690, %v1689
    %v1705 = vpack.c.b16 %v1692, %v1691
    %v1706 = vpack.c.b16 %v1694, %v1693
    %v1707 = vpack.c.b16 %v1696, %v1695
    %v1708 = vpack.c.b16 %v1698, %v1697
    %v1709 = vpack.c.b16 %v1700, %v1699
    %v1710 = vpack.c.b16 %v1702, %v1701
    %1719 = vmatpush.bf16.msra.mxu0 %v1710
    %1720 = vmatpush.bf16.msra.mxu0 %v1709
    %1721 = vmatpush.bf16.msra.mxu0 %v1708
    %1722 = vmatpush.bf16.msra.mxu0 %v1707
    %1723 = vmatpush.bf16.msra.mxu0 %v1706
    %1724 = vmatpush.bf16.msra.mxu0 %v1705
    %1725 = vmatpush.bf16.msra.mxu0 %v1704
    %1726 = vmatpush.bf16.msra.mxu0 %v1703
    %1727 = vmatmul.bf16.gmra.mxu0 %v1650
    %v1728 = vpop.f32.mrf.mxu0
    %v1729 = vadd.f32 %v1669, %v1728
    %v1730 = vpop.f32.mrf.mxu0
    %1731 = vdwg.mxu0
    %vm1732 = vcmask 25600
    %v1733 = vsel %vm1732, %v1729, -inf
    %1734 = vmax.xlane.f32.xlu0 %v1733
    %v1735 = vpop.xlane.xlu0 %1734
    %v1736 = vsub.f32 %v1729, %v1735
    %v1737 = vmul.f32 %v1736, 1.442695
    %v1738 = vpow.pop %v1737
    %v1739 = vsel %vm1732, %v1738, 0.0
    %1740 = vadd.xlane.f32.xlu0 %v1739
    %v1741 = vpop.xlane.xlu0 %1740
    %v1742 = vrcp.pop %v1741
    %v1743 = vmul.f32 %v1738, %v1742
    %1744 = vst.msk [vmem:[#allocation13] sm:$0x3] %vm1732, %v1743
    %v1745 = vpack.c.bf16 %v1648, %v1648
    %s1746 = scalar_lea.vmem %s8, 64
    %v1747 = vld [vmem:[%s1746] sm:$0xf]
    %v1748 = vld [vmem:[%s1746 + $0x4] sm:$0xf]
    %v1749 = vld [vmem:[%s1746 + $0x8] sm:$0xf]
    %v1750 = vld [vmem:[%s1746 + $0xc] sm:$0xf]
    %v1751 = vld [vmem:[%s1746 + $0x10] sm:$0xf]
    %v1752 = vld [vmem:[%s1746 + $0x14] sm:$0xf]
    %v1753 = vld [vmem:[%s1746 + $0x18] sm:$0xf]
    %v1754 = vld [vmem:[%s1746 + $0x1c] sm:$0xf]
    %v1755 = vld [vmem:[%s1746 + $0x20] sm:$0xf]
    %v1756 = vld [vmem:[%s1746 + $0x24] sm:$0xf]
    %v1757 = vld [vmem:[%s1746 + $0x28] sm:$0xf]
    %v1758 = vld [vmem:[%s1746 + $0x2c] sm:$0xf]
    %v1759 = vld [vmem:[%s1746 + $0x30] sm:$0xf]
    %v1760 = vld [vmem:[%s1746 + $0x34] sm:$0xf]
    %v1761 = vld [vmem:[%s1746 + $0x38] sm:$0xf]
    %v1762 = vld [vmem:[%s1746 + $0x3c] sm:$0xf]
    %s1763 = scalar_lea.vmem %s9, 1
    %v1764 = vld [vmem:[%s1763] sm:$0x1]
    %v1766 = vperm.slane %v1764, 0
    %v1784 = vunpack.c.l.b16 %v1747
    %v1785 = vunpack.c.l.b16 %v1748
    %v1786 = vunpack.c.l.b16 %v1749
    %v1787 = vunpack.c.l.b16 %v1750
    %v1788 = vunpack.c.l.b16 %v1751
    %v1789 = vunpack.c.l.b16 %v1752
    %v1790 = vunpack.c.l.b16 %v1753
    %v1791 = vunpack.c.l.b16 %v1754
    %v1792 = vunpack.c.l.b16 %v1755
    %v1793 = vunpack.c.l.b16 %v1756
    %v1794 = vunpack.c.l.b16 %v1757
    %v1795 = vunpack.c.l.b16 %v1758
    %v1796 = vunpack.c.l.b16 %v1759
    %v1797 = vunpack.c.l.b16 %v1760
    %v1798 = vunpack.c.l.b16 %v1761
    %v1799 = vunpack.c.l.b16 %v1762
    %v1800 = vpack.c.b16 %v1785, %v1784
    %v1801 = vpack.c.b16 %v1787, %v1786
    %v1802 = vpack.c.b16 %v1789, %v1788
    %v1803 = vpack.c.b16 %v1791, %v1790
    %v1804 = vpack.c.b16 %v1793, %v1792
    %v1805 = vpack.c.b16 %v1795, %v1794
    %v1806 = vpack.c.b16 %v1797, %v1796
    %v1807 = vpack.c.b16 %v1799, %v1798
    %1816 = vmatpush.bf16.msra.mxu0 %v1807
    %1817 = vmatpush.bf16.msra.mxu0 %v1806
    %1818 = vmatpush.bf16.msra.mxu0 %v1805
    %1819 = vmatpush.bf16.msra.mxu0 %v1804
    %1820 = vmatpush.bf16.msra.mxu0 %v1803
    %1821 = vmatpush.bf16.msra.mxu0 %v1802
    %1822 = vmatpush.bf16.msra.mxu0 %v1801
    %1823 = vmatpush.bf16.msra.mxu0 %v1800
    %1824 = vmatmul.bf16.gmra.mxu0 %v1745
    %v1825 = vpop.f32.mrf.mxu0
    %v1826 = vadd.f32 %v1766, %v1825
    %v1827 = vpop.f32.mrf.mxu0
    %1828 = vdwg.mxu0
    %v1829 = vsel %vm1732, %v1826, -inf
    %1830 = vmax.xlane.f32.xlu0 %v1829
    %v1831 = vpop.xlane.xlu0 %1830
    %v1832 = vsub.f32 %v1826, %v1831
    %v1833 = vmul.f32 %v1832, 1.442695
    %v1834 = vpow.pop %v1833
    %v1835 = vsel %vm1732, %v1834, 0.0
    %1836 = vadd.xlane.f32.xlu0 %v1835
    %v1837 = vpop.xlane.xlu0 %1836
    %v1838 = vrcp.pop %v1837
    %v1839 = vmul.f32 %v1834, %v1838
    %s1840 = scalar_lea.vmem [#allocation13], 2
    %1841 = vst.msk [vmem:[%s1840] sm:$0x3] %vm1732, %v1839
    %v1842 = vpack.c.bf16 %v1649, %v1649
    %s1843 = scalar_lea.vmem %s8, 128
    %v1844 = vld [vmem:[%s1843] sm:$0xf]
    %v1845 = vld [vmem:[%s1843 + $0x4] sm:$0xf]
    %v1846 = vld [vmem:[%s1843 + $0x8] sm:$0xf]
    %v1847 = vld [vmem:[%s1843 + $0xc] sm:$0xf]
    %v1848 = vld [vmem:[%s1843 + $0x10] sm:$0xf]
    %v1849 = vld [vmem:[%s1843 + $0x14] sm:$0xf]
    %v1850 = vld [vmem:[%s1843 + $0x18] sm:$0xf]
    %v1851 = vld [vmem:[%s1843 + $0x1c] sm:$0xf]
    %v1852 = vld [vmem:[%s1843 + $0x20] sm:$0xf]
    %v1853 = vld [vmem:[%s1843 + $0x24] sm:$0xf]
    %v1854 = vld [vmem:[%s1843 + $0x28] sm:$0xf]
    %v1855 = vld [vmem:[%s1843 + $0x2c] sm:$0xf]
    %v1856 = vld [vmem:[%s1843 + $0x30] sm:$0xf]
    %v1857 = vld [vmem:[%s1843 + $0x34] sm:$0xf]
    %v1858 = vld [vmem:[%s1843 + $0x38] sm:$0xf]
    %v1859 = vld [vmem:[%s1843 + $0x3c] sm:$0xf]
    %s1860 = scalar_lea.vmem %s9, 2
    %v1861 = vld [vmem:[%s1860] sm:$0x1]
    %v1863 = vperm.slane %v1861, 0
    %v1881 = vunpack.c.l.b16 %v1844
    %v1882 = vunpack.c.l.b16 %v1845
    %v1883 = vunpack.c.l.b16 %v1846
    %v1884 = vunpack.c.l.b16 %v1847
    %v1885 = vunpack.c.l.b16 %v1848
    %v1886 = vunpack.c.l.b16 %v1849
    %v1887 = vunpack.c.l.b16 %v1850
    %v1888 = vunpack.c.l.b16 %v1851
    %v1889 = vunpack.c.l.b16 %v1852
    %v1890 = vunpack.c.l.b16 %v1853
    %v1891 = vunpack.c.l.b16 %v1854
    %v1892 = vunpack.c.l.b16 %v1855
    %v1893 = vunpack.c.l.b16 %v1856
    %v1894 = vunpack.c.l.b16 %v1857
    %v1895 = vunpack.c.l.b16 %v1858
    %v1896 = vunpack.c.l.b16 %v1859
    %v1897 = vpack.c.b16 %v1882, %v1881
    %v1898 = vpack.c.b16 %v1884, %v1883
    %v1899 = vpack.c.b16 %v1886, %v1885
    %v1900 = vpack.c.b16 %v1888, %v1887
    %v1901 = vpack.c.b16 %v1890, %v1889
    %v1902 = vpack.c.b16 %v1892, %v1891
    %v1903 = vpack.c.b16 %v1894, %v1893
    %v1904 = vpack.c.b16 %v1896, %v1895
    %1913 = vmatpush.bf16.msra.mxu0 %v1904
    %1914 = vmatpush.bf16.msra.mxu0 %v1903
    %1915 = vmatpush.bf16.msra.mxu0 %v1902
    %1916 = vmatpush.bf16.msra.mxu0 %v1901
    %1917 = vmatpush.bf16.msra.mxu0 %v1900
    %1918 = vmatpush.bf16.msra.mxu0 %v1899
    %1919 = vmatpush.bf16.msra.mxu0 %v1898
    %1920 = vmatpush.bf16.msra.mxu0 %v1897
    %1921 = vmatmul.bf16.gmra.mxu0 %v1842
    %v1922 = vpop.f32.mrf.mxu0
    %v1923 = vadd.f32 %v1863, %v1922
    %v1924 = vpop.f32.mrf.mxu0
    %1925 = vdwg.mxu0
    %v1926 = vsel %vm1732, %v1923, -inf
    %1927 = vmax.xlane.f32.xlu0 %v1926
    %v1928 = vpop.xlane.xlu0 %1927
    %v1929 = vsub.f32 %v1923, %v1928
    %v1930 = vmul.f32 %v1929, 1.442695
    %v1931 = vpow.pop %v1930
    %v1932 = vsel %vm1732, %v1931, 0.0
    %1933 = vadd.xlane.f32.xlu0 %v1932
    %v1934 = vpop.xlane.xlu0 %1933
    %v1935 = vrcp.pop %v1934
    %v1936 = vmul.f32 %v1931, %v1935
    %s1937 = scalar_lea.vmem [#allocation13], 4
    %1938 = vst.msk [vmem:[%s1937] sm:$0x3] %vm1732, %v1936
    // Predicated region
    $region66: #{tpu_custom_call.1} parent=1 // pred_check
      _
    $region67: #{tpu_custom_call.1} parent=1 // pred_check_branch
      %1940 = sbr.rel (0) target = $region69
    $region68: #{tpu_custom_call.1} parent=1 // pred_region
      %1942 = vsyncadd [#allocation4], 0
      %s1943 = sshll.u32 [#allocation13], 4
      %s1944 = int_to_ptr.vmem [resolvable:$true] %s1943
      %s1945 = sshll.u32 %s10, 4
      %s1946 = int_to_ptr.hbm [resolvable:$true] %s1945
      %1951 = dma.vmem_to_hbm [thread:$0]  %s1944, 96, %s1946, [#allocation4], 32, 32, 2
    $region69: #{tpu_custom_call.1} parent=1 // pred_fallthru
      _
    // Predicated region
    $region70: #{tpu_custom_call.1} parent=1 // pred_check
      _
    $region71: #{tpu_custom_call.1} parent=1 // pred_check_branch
      %1953 = sbr.rel (0) target = $region73
    $region72: #{tpu_custom_call.1} parent=1 // pred_region
      %1955 = dma.done [#allocation4], 96
    $region73: #{tpu_custom_call.1} parent=1 // pred_fallthru
      _
    %1956 = vsyncpa [#allocation3], 1
    %1957 = vsyncpa [#allocation6], 1
    %1958 = vsyncpa [#allocation9], 1
    %1959 = vsyncpa [#allocation12], 1
    %1960 = vsyncpa [#allocation4], 1

</llo_original>
